<compile_context>
chip_gen: v7x
topology: tpu7x:2x2x1
jax: 0.10.0
libtpu: 0.0.40
codegen_flags: <defaults>
</compile_context>

<pallas_src>
import functools

import jax
import jax.numpy as jnp
from jax.experimental import pallas as pl
from jax.experimental.pallas import tpu as pltpu


# ----------------------------------------------------------------------------
# helpers
# ----------------------------------------------------------------------------
def _round_up(x, m):
    return ((x + m - 1) // m) * m


def _pick_tile(dim_pad, unit, max_tile):
    """Largest multiple of `unit` that divides dim_pad and is <= max_tile."""
    best = unit
    t = unit
    while t <= min(dim_pad, max_tile):
        if dim_pad % t == 0:
            best = t
        t += unit
    return best


# ----------------------------------------------------------------------------
# Pallas kernel: TT fused SNN timesteps per grid step for one (batch, out) tile
# ----------------------------------------------------------------------------
def _snn_seq_kernel(x_ref, wt_ref, mem0_ref, spk0_ref, alpha_ref, *rest,
                    thresh, tt, tb, t_total, needs_guard, emit_mems_sequence):
    if emit_mems_sequence:
        spk_seq_ref, mem_seq_ref, mem_fin_ref, mem_sc, spk_sc = rest
    else:
        spk_seq_ref, mem_fin_ref, mem_sc, spk_sc = rest
        mem_seq_ref = None

    tc = pl.program_id(2)

    @pl.when(tc == 0)
    def _init():
        mem_sc[...] = mem0_ref[...]
        spk_sc[...] = spk0_ref[...]

    k = x_ref.shape[-1]
    # One MXU call for the whole time chunk: (tt*tb, K) @ (K, TN), f32 accumulation.
    x2d = x_ref[...].reshape(tt * tb, k)
    cur_all = jnp.dot(x2d, wt_ref[...], preferred_element_type=jnp.float32)

    alpha = alpha_ref[...]                 # (1, TN), broadcasts over the batch tile
    mem = mem_sc[...]
    spk = spk_sc[...]                      # spikes are exactly 0.0 / 1.0

    # Unrolled per-step recurrence (pure VPU) over the chunk.
    for s in range(tt):
        cur = cur_all[s * tb:(s + 1) * tb, :]
        # mem * alpha * (1 - o_spike) folded into a single select (spikes binary).
        mem_new = jnp.where(spk == 0.0, mem * alpha, 0.0) + cur
        # ActFunFastSigmoid.forward: heaviside on (mem - thresh); strict '>' spike,
        # strict '<' reset => at-threshold membranes reset without spiking.
        spike = (mem_new - thresh > 0.0).astype(jnp.float32)
        mem_rst = jnp.where(mem_new < thresh, mem_new, 0.0)

        spk_seq_ref[s] = spike.astype(spk_seq_ref.dtype)
        if mem_seq_ref is not None:
            mem_seq_ref[s] = mem_rst

        if needs_guard:
            # Padded (beyond-T) steps must not advance the carried state.
            valid = (tc * tt + s) < t_total
            mem = jnp.where(valid, mem_rst, mem)
            spk = jnp.where(valid, spike, spk)
        else:
            mem, spk = mem_rst, spike

    mem_sc[...] = mem
    spk_sc[...] = spk

    @pl.when(tc == pl.num_programs(2) - 1)
    def _finalize():
        mem_fin_ref[...] = mem


# ----------------------------------------------------------------------------
# wrappers
# ----------------------------------------------------------------------------
def snn_forward_sequence(x_seq, mems0, spikes0, weight, tau_m, thresh, *,
                         tile_b=128, tile_n=512, time_chunk=16,
                         matmul_dtype=jnp.bfloat16,
                         spike_seq_dtype=jnp.bfloat16,
                         emit_mems_sequence=False,
                         vmem_limit_bytes=None):
    """Run T timesteps of FeedforwardSNNLayer in a single fused Pallas kernel.

    x_seq:   (T, B, num_in)   spikes feeding this layer (one slice per timestep)
    mems0:   (B, num_out)     initial membrane state
    spikes0: (B, num_out)     initial output-spike state (binary)
    weight:  (num_out, num_in) nn.Linear weight (no bias)
    tau_m:   (num_out,)
    Returns (spikes_seq (T,B,num_out) in spike_seq_dtype, mems_seq-or-None (f32),
             mems_final (f32), spikes_final (f32)).
    """
    T, B, num_in = x_seq.shape
    num_out, k_in = weight.shape
    assert k_in == num_in, (weight.shape, num_in)

    # --- batch tiling: multiples of 16 (bf16 packs two rows per sublane) ---
    TB = min(tile_b, _round_up(max(B, 1), 16))
    B_pad = _round_up(max(B, 1), TB)
    n_b = B_pad // TB

    # --- output tiling: keep full width resident when it fits; if the batch gives
    # only one tile, split the output into two lane-dense tiles for v7x megacore ---
    N_pad = _round_up(num_out, 128)
    if N_pad <= tile_n:
        if n_b == 1 and N_pad >= 256:
            N_pad = _round_up(num_out, 256)
            TN = N_pad // 2
        else:
            TN = N_pad
    else:
        TN = _pick_tile(N_pad, 128, tile_n)
    n_j = N_pad // TN

    K_pad = _round_up(num_in, 128)

    # --- time chunking ---
    TT = max(1, min(int(time_chunk), T))
    T_pad = _round_up(T, TT)
    n_t = T_pad // TT
    needs_guard = (T_pad != T)

    # One-time layout prep for the whole sequence (amortized over T steps).
    x_p = x_seq.astype(matmul_dtype)
    if (T_pad, B_pad, K_pad) != (T, B, num_in):
        x_p = jnp.pad(x_p, ((0, T_pad - T), (0, B_pad - B), (0, K_pad - num_in)))
    wt_p = weight.astype(matmul_dtype).T
    if (K_pad, N_pad) != (num_in, num_out):
        wt_p = jnp.pad(wt_p, ((0, K_pad - num_in), (0, N_pad - num_out)))
    mem_p = jnp.pad(mems0.astype(jnp.float32),
                    ((0, B_pad - B), (0, N_pad - num_out)))
    spk_p = jnp.pad(spikes0.astype(jnp.float32),
                    ((0, B_pad - B), (0, N_pad - num_out)))
    alpha_p = jnp.pad(jax.nn.sigmoid(tau_m.astype(jnp.float32))[None, :],
                      ((0, 0), (0, N_pad - num_out)))

    grid = (n_j, n_b, n_t)               # (out tiles, batch tiles, time chunks)

    in_specs = [
        pl.BlockSpec((TT, TB, K_pad), lambda j, i, t: (t, i, 0)),  # x chunk
        pl.BlockSpec((K_pad, TN),     lambda j, i, t: (0, j)),     # W.T (resident)
        pl.BlockSpec((TB, TN),        lambda j, i, t: (i, j)),     # mems0
        pl.BlockSpec((TB, TN),        lambda j, i, t: (i, j)),     # spikes0
        pl.BlockSpec((1, TN),         lambda j, i, t: (0, j)),     # alpha
    ]
    out_shape = [jax.ShapeDtypeStruct((T_pad, B_pad, N_pad), spike_seq_dtype)]
    out_specs = [pl.BlockSpec((TT, TB, TN), lambda j, i, t: (t, i, j))]
    if emit_mems_sequence:
        out_shape.append(jax.ShapeDtypeStruct((T_pad, B_pad, N_pad), jnp.float32))
        out_specs.append(pl.BlockSpec((TT, TB, TN), lambda j, i, t: (t, i, j)))
    out_shape.append(jax.ShapeDtypeStruct((B_pad, N_pad), jnp.float32))  # final mems
    out_specs.append(pl.BlockSpec((TB, TN), lambda j, i, t: (i, j)))

    kernel = functools.partial(
        _snn_seq_kernel, thresh=float(thresh), tt=TT, tb=TB, t_total=T,
        needs_guard=needs_guard, emit_mems_sequence=emit_mems_sequence)

    # Rough VMEM budget (double-buffered pipeline blocks + scratch + temporaries);
    # only set an explicit limit when the default scoped limit would be exceeded.
    seq_b = jnp.dtype(spike_seq_dtype).itemsize
    est = (2 * TT * TB * K_pad * 2            # x chunk, double-buffered bf16
           + 2 * K_pad * TN * 2               # W.T
           + 4 * TB * TN * 4 + 2 * TN * 4     # mems0/spikes0/alpha blocks
           + 2 * TT * TB * TN * seq_b         # spike sequence chunk
           + (2 * TT * TB * TN * 4 if emit_mems_sequence else 0)
           + 2 * TB * TN * 4                  # final mems block
           + 2 * TB * TN * 4                  # state scratch
           + TT * TB * TN * 4)                # cur_all temporary
    if vmem_limit_bytes is None and est > 30 * 1024 * 1024:
        vmem_limit_bytes = min(int(est * 5 // 4), 96 * 1024 * 1024)

    results = pl.pallas_call(
        kernel,
        out_shape=tuple(out_shape),
        grid_spec=pltpu.PrefetchScalarGridSpec(
            num_scalar_prefetch=0,
            grid=grid,
            in_specs=in_specs,
            out_specs=tuple(out_specs),
            scratch_shapes=[pltpu.VMEM((TB, TN), jnp.float32),   # membrane state
                            pltpu.VMEM((TB, TN), jnp.float32)],  # spike state
        ),
        compiler_params=pltpu.CompilerParams(
            dimension_semantics=("parallel", "parallel", "arbitrary"),
            vmem_limit_bytes=vmem_limit_bytes),
    )(x_p, wt_p, mem_p, spk_p, alpha_p)

    if emit_mems_sequence:
        spk_seq, mem_seq, mem_fin = results
        mem_seq = mem_seq[:T, :B, :num_out]
    else:
        spk_seq, mem_fin = results
        mem_seq = None
    spk_seq = spk_seq[:T, :B, :num_out]
    spk_fin = spk_seq[T - 1].astype(jnp.float32)   # exact: spikes are 0/1 in bf16
    return spk_seq, mem_seq, mem_fin[:B, :num_out], spk_fin


def snn_step(prev_spikes, own_mems, own_spikes, weight, tau_m, thresh, **kwargs):
    """Exact equivalent of FeedforwardSNNLayer.forward (no delays): one timestep."""
    _, _, mems, spikes = snn_forward_sequence(
        prev_spikes[None], own_mems, own_spikes, weight, tau_m, thresh, **kwargs)
    return mems, spikes


def build_delayed_inputs(x_seq, delays):
    """Vectorized equivalent of the module's per-step delayed_spike_queue handling
    (update_queue + queue[:, delays, :].transpose(1, 2).reshape(B, -1)), assuming the
    queue starts zero-initialized. Output: (T, B, num_in * len(delays))."""
    T = x_seq.shape[0]
    shifted = [jnp.pad(x_seq, ((d, 0), (0, 0), (0, 0)))[:T] for d in delays]
    return jnp.stack(shifted, axis=-1).reshape(T, x_seq.shape[1], -1)


def snn_forward_sequence_with_delays(x_seq, mems0, spikes0, weight, tau_m, thresh,
                                     delays, **kwargs):
    """fanin_delays variant: weight has shape (num_out, num_in * len(delays))."""
    # TODO(synk): gather the delayed spikes inside the kernel (per-delay weight slabs
    # accumulated against shifted x windows) to avoid materializing the widened
    # (T, B, num_in*len(delays)) array in HBM.
    flat = build_delayed_inputs(x_seq, delays)
    return snn_forward_sequence(flat, mems0, spikes0, weight, tau_m, thresh, **kwargs)


# ----------------------------------------------------------------------------
# plain-JAX references (for the smoke test)
# ----------------------------------------------------------------------------
def _reference_sequence(x_seq, mems0, spikes0, weight, tau_m, thresh,
                        matmul_dtype=jnp.bfloat16, border_eps=1e-3):
    """Step-by-step reference with operands rounded to matmul_dtype and f32 accumulation.
    Also returns a per-timestep reliability mask excluding elements whose membrane ever
    came within border_eps of the threshold (spike decision there is sensitive to
    matmul accumulation order)."""
    alpha = jax.nn.sigmoid(tau_m.astype(jnp.float32))[None, :]
    w = weight.astype(matmul_dtype).astype(jnp.float32)
    mem = mems0.astype(jnp.float32)
    spk = spikes0.astype(jnp.float32)
    reliable = jnp.ones(mem.shape, dtype=bool)
    mems, spks, masks = [], [], []
    for t in range(x_seq.shape[0]):
        x = x_seq[t].astype(matmul_dtype).astype(jnp.float32)
        mem = mem * alpha * (1.0 - spk) + x @ w.T
        reliable = reliable & (jnp.abs(mem - thresh) > border_eps)
        spk = (mem - thresh > 0.0).astype(jnp.float32)
        mem = mem * (mem < thresh).astype(jnp.float32)
        mems.append(mem)
        spks.append(spk)
        masks.append(reliable)
    return jnp.stack(mems), jnp.stack(spks), jnp.stack(masks)


def _delayed_inputs_reference(x_seq, delays, num_in):
    """Literal port of the module's queue bookkeeping (checks build_delayed_inputs)."""
    T, B, _ = x_seq.shape
    max_d = delays[-1] + 1
    queue = jnp.zeros((B, max_d + 1, num_in), jnp.float32)
    d_idx = jnp.asarray(delays)
    flats = []
    for t in range(T):
        queue = jnp.concatenate([x_seq[t][:, None, :], queue[:, :-1, :]], axis=1)
        gathered = queue[:, d_idx, :]                          # (B, D, num_in)
        flats.append(jnp.transpose(gathered, (0, 2, 1)).reshape(B, -1))
    return jnp.stack(flats)


def _masked_close(got, want, mask, atol):
    got = got.astype(jnp.float32)
    want = want.astype(jnp.float32)
    return bool(jnp.all(jnp.where(mask, jnp.abs(got - want) <= atol, True)))


# ----------------------------------------------------------------------------
# demo / smoke test
# ----------------------------------------------------------------------------
if __name__ == "__main__":
    key = jax.random.PRNGKey(0)
    ks = jax.random.split(key, 6)

    T, B = 10, 6
    num_in, num_out = 200, 300
    thresh = 0.3  # inf_th=False

    weight = (jax.random.normal(ks[0], (num_out, num_in), jnp.float32)
              / jnp.sqrt(jnp.float32(num_in)))
    tau_m = jnp.linspace(-1.0, 2.0, num_out, dtype=jnp.float32)

    x_seq = (jax.random.uniform(ks[1], (T, B, num_in)) < 0.3).astype(jnp.float32)
    mems0 = 0.2 * jax.random.normal(ks[2], (B, num_out), jnp.float32)
    spikes0 = (jax.random.uniform(ks[3], (B, num_out)) < 0.2).astype(jnp.float32)

    mem_ref, spk_ref, ok = _reference_sequence(
        x_seq, mems0, spikes0, weight, tau_m, thresh)
    assert float(jnp.mean(ok.astype(jnp.float32))) > 0.5, "too few reliable elements"

    # ---- fused multi-timestep path, time_chunk=4 (T=10 -> exercises ragged-chunk guard)
    spk_seq, mem_seq, mem_fin, spk_fin = snn_forward_sequence(
        x_seq, mems0, spikes0, weight, tau_m, thresh,
        emit_mems_sequence=True, time_chunk=4)
    jax.block_until_ready((spk_seq, mem_seq, mem_fin, spk_fin))

    assert _masked_close(mem_seq, mem_ref, ok, 1e-4), "mems sequence mismatch"
    assert _masked_close(spk_seq, spk_ref, ok, 0.0), "spikes sequence mismatch"
    assert _masked_close(mem_fin, mem_ref[-1], ok[-1], 1e-4), "final mems mismatch"
    assert _masked_close(spk_fin, spk_ref[-1], ok[-1], 0.0), "final spikes mismatch"

    # ---- default chunking (whole sequence in one chunk, no guard) ----
    spk_seq2, _, mem_fin2, spk_fin2 = snn_forward_sequence(
        x_seq, mems0, spikes0, weight, tau_m, thresh)
    jax.block_until_ready((spk_seq2, mem_fin2, spk_fin2))
    assert _masked_close(spk_seq2, spk_ref, ok, 0.0), "spikes mismatch (default chunk)"
    assert _masked_close(mem_fin2, mem_ref[-1], ok[-1], 1e-4), "mems mismatch (default chunk)"

    # ---- single-timestep API (matches FeedforwardSNNLayer.forward exactly) ----
    mem1, spk1 = snn_step(x_seq[0], mems0, spikes0, weight, tau_m, thresh)
    jax.block_until_ready((mem1, spk1))
    assert _masked_close(mem1, mem_ref[0], ok[0], 1e-4), "single-step mems mismatch"
    assert _masked_close(spk1, spk_ref[0], ok[0], 0.0), "single-step spikes mismatch"

    # ---- fanin_delays path ----
    delays = (0, 3, 6)
    weight_d = (jax.random.normal(ks[4], (num_out, num_in * len(delays)), jnp.float32)
                / jnp.sqrt(jnp.float32(num_in * len(delays))))

    flat_vec = build_delayed_inputs(x_seq, delays)
    flat_ref = _delayed_inputs_reference(x_seq, delays, num_in)
    assert bool(jnp.all(flat_vec == flat_ref)), "delayed-input build mismatch"

    spk_seq_d, mem_seq_d, mem_fin_d, spk_fin_d = snn_forward_sequence_with_delays(
        x_seq, mems0, spikes0, weight_d, tau_m, thresh, delays,
        emit_mems_sequence=True, time_chunk=8)
    jax.block_until_ready((spk_seq_d, mem_seq_d, mem_fin_d, spk_fin_d))

    mem_ref_d, spk_ref_d, ok_d = _reference_sequence(
        flat_ref, mems0, spikes0, weight_d, tau_m, thresh)
    assert _masked_close(mem_seq_d, mem_ref_d, ok_d, 1e-4), "delays mems mismatch"
    assert _masked_close(spk_seq_d, spk_ref_d, ok_d, 0.0), "delays spikes mismatch"

    print("KERNEL_OK")
</pallas_src>

<mosaic_0001>
module attributes {stable_mosaic.version = 11 : i64} {
  func.func @_snn_seq_kernel(%arg0: i32, %arg1: i32, %arg2: i32, %arg3: memref<4x16x256xbf16, #tpu.memory_space<vmem>>, %arg4: memref<256x256xbf16, #tpu.memory_space<vmem>>, %arg5: memref<16x256xf32, #tpu.memory_space<vmem>>, %arg6: memref<16x256xf32, #tpu.memory_space<vmem>>, %arg7: memref<1x256xf32, #tpu.memory_space<vmem>>, %arg8: memref<4x16x256xbf16, #tpu.memory_space<vmem>>, %arg9: memref<4x16x256xf32, #tpu.memory_space<vmem>>, %arg10: memref<16x256xf32, #tpu.memory_space<vmem>>, %arg11: memref<16x256xf32, #tpu.memory_space<vmem>>, %arg12: memref<16x256xf32, #tpu.memory_space<vmem>>) attributes {dimension_semantics = [#tpu.dimension_semantics<parallel>, #tpu.dimension_semantics<parallel>, #tpu.dimension_semantics<arbitrary>], iteration_bounds = array<i64: 2, 1, 3>, scalar_prefetch = 0 : i64, scratch_operands = 2 : i64, tpu.core_type = #tpu.core_type<tc>, window_params = [{transform_indices = @transform_0, window_bounds = array<i64: 4, 16, 256>}, {transform_indices = @transform_1, window_bounds = array<i64: 256, 256>}, {transform_indices = @transform_2, window_bounds = array<i64: 16, 256>}, {transform_indices = @transform_3, window_bounds = array<i64: 16, 256>}, {transform_indices = @transform_4, window_bounds = array<i64: 1, 256>}, {transform_indices = @transform_5, window_bounds = array<i64: 4, 16, 256>}, {transform_indices = @transform_6, window_bounds = array<i64: 4, 16, 256>}, {transform_indices = @transform_7, window_bounds = array<i64: 16, 256>}]} {
    %c0_i32 = arith.constant 0 : i32
    %0 = arith.cmpi eq, %arg2, %c0_i32 : i32
    %1 = arith.extui %0 : i1 to i32
    %c0_i32_0 = arith.constant 0 : i32
    %2 = arith.cmpi ne, %1, %c0_i32_0 : i32
    scf.if %2 {
      %c0_69 = arith.constant 0 : index
      %c0_70 = arith.constant 0 : index
      %135 = vector.load %arg5[%c0_69, %c0_70] : memref<16x256xf32, #tpu.memory_space<vmem>>, vector<16x256xf32>
      %c0_71 = arith.constant 0 : index
      %c0_72 = arith.constant 0 : index
      %136 = vector.load %arg11[%c0_71, %c0_72] : memref<16x256xf32, #tpu.memory_space<vmem>>, vector<16x256xf32>
      tpu.vector_store %arg11[%c0_71, %c0_72], %135 {strides = array<i32>} : memref<16x256xf32, #tpu.memory_space<vmem>>, vector<16x256xf32>,
      %c0_73 = arith.constant 0 : index
      %c0_74 = arith.constant 0 : index
      %137 = vector.load %arg6[%c0_73, %c0_74] : memref<16x256xf32, #tpu.memory_space<vmem>>, vector<16x256xf32>
      %c0_75 = arith.constant 0 : index
      %c0_76 = arith.constant 0 : index
      %138 = vector.load %arg12[%c0_75, %c0_76] : memref<16x256xf32, #tpu.memory_space<vmem>>, vector<16x256xf32>
      tpu.vector_store %arg12[%c0_75, %c0_76], %137 {strides = array<i32>} : memref<16x256xf32, #tpu.memory_space<vmem>>, vector<16x256xf32>,
    } else {
    }
    %c0 = arith.constant 0 : index
    %c0_1 = arith.constant 0 : index
    %c0_2 = arith.constant 0 : index
    %3 = vector.load %arg3[%c0, %c0_1, %c0_2] : memref<4x16x256xbf16, #tpu.memory_space<vmem>>, vector<4x16x256xbf16>
    %4 = vector.shape_cast %3 : vector<4x16x256xbf16> to vector<64x256xbf16>
    %c0_3 = arith.constant 0 : index
    %c0_4 = arith.constant 0 : index
    %5 = vector.load %arg4[%c0_3, %c0_4] : memref<256x256xbf16, #tpu.memory_space<vmem>>, vector<256x256xbf16>
    %cst = arith.constant dense<0.000000e+00> : vector<64x256xf32>
    %6 = tpu.matmul %4, %5, %cst {dimension_numbers = #tpu.dot_dimension_numbers<[1], [0], [0], [1], [0, 0, 1, 1], [], []>} : vector<64x256xbf16>, vector<256x256xbf16>, vector<64x256xf32> -> vector<64x256xf32>
    %c0_5 = arith.constant 0 : index
    %c0_6 = arith.constant 0 : index
    %7 = vector.load %arg7[%c0_5, %c0_6] : memref<1x256xf32, #tpu.memory_space<vmem>>, vector<1x256xf32>
    %c0_7 = arith.constant 0 : index
    %c0_8 = arith.constant 0 : index
    %8 = vector.load %arg11[%c0_7, %c0_8] : memref<16x256xf32, #tpu.memory_space<vmem>>, vector<16x256xf32>
    %c0_9 = arith.constant 0 : index
    %c0_10 = arith.constant 0 : index
    %9 = vector.load %arg12[%c0_9, %c0_10] : memref<16x256xf32, #tpu.memory_space<vmem>>, vector<16x256xf32>
    %10 = vector.extract_strided_slice %6 {offsets = [0, 0], sizes = [16, 256], strides = [1, 1]} : vector<64x256xf32> to vector<16x256xf32>
    %cst_11 = arith.constant 0.000000e+00 : f32
    %11 = vector.broadcast %cst_11 : f32 to vector<16x256xf32>
    %12 = arith.cmpf oeq, %9, %11 : vector<16x256xf32>
    %13 = vector.broadcast %7 : vector<1x256xf32> to vector<16x256xf32>
    %14 = arith.mulf %8, %13 : vector<16x256xf32>
    %cst_12 = arith.constant 0.000000e+00 : f32
    %15 = vector.broadcast %cst_12 : f32 to vector<16x256xf32>
    %16 = arith.select %12, %14, %15 : vector<16x256xi1>, vector<16x256xf32>
    %17 = arith.addf %16, %10 : vector<16x256xf32>
    %cst_13 = arith.constant 3.000000e-01 : f32
    %18 = vector.broadcast %cst_13 : f32 to vector<16x256xf32>
    %19 = arith.subf %17, %18 : vector<16x256xf32>
    %cst_14 = arith.constant 0.000000e+00 : f32
    %20 = vector.broadcast %cst_14 : f32 to vector<16x256xf32>
    %21 = arith.cmpf ogt, %19, %20 : vector<16x256xf32>
    %22 = arith.extui %21 : vector<16x256xi1> to vector<16x256xi32>
    %23 = arith.sitofp %22 : vector<16x256xi32> to vector<16x256xf32>
    %cst_15 = arith.constant 3.000000e-01 : f32
    %24 = vector.broadcast %cst_15 : f32 to vector<16x256xf32>
    %25 = arith.cmpf olt, %17, %24 : vector<16x256xf32>
    %cst_16 = arith.constant 0.000000e+00 : f32
    %26 = vector.broadcast %cst_16 : f32 to vector<16x256xf32>
    %27 = arith.select %25, %17, %26 : vector<16x256xi1>, vector<16x256xf32>
    %28 = arith.truncf %23 : vector<16x256xf32> to vector<16x256xbf16>
    %c0_17 = arith.constant 0 : index
    %c0_18 = arith.constant 0 : index
    %c0_19 = arith.constant 0 : index
    %29 = vector.load %arg8[%c0_17, %c0_18, %c0_19] : memref<4x16x256xbf16, #tpu.memory_space<vmem>>, vector<1x16x256xbf16>
    %30 = vector.shape_cast %29 : vector<1x16x256xbf16> to vector<16x256xbf16>
    %31 = vector.shape_cast %28 : vector<16x256xbf16> to vector<1x16x256xbf16>
    tpu.vector_store %arg8[%c0_17, %c0_18, %c0_19], %31 {strides = array<i32>} : memref<4x16x256xbf16, #tpu.memory_space<vmem>>, vector<1x16x256xbf16>,
    %c0_20 = arith.constant 0 : index
    %c0_21 = arith.constant 0 : index
    %c0_22 = arith.constant 0 : index
    %32 = vector.load %arg9[%c0_20, %c0_21, %c0_22] : memref<4x16x256xf32, #tpu.memory_space<vmem>>, vector<1x16x256xf32>
    %33 = vector.shape_cast %32 : vector<1x16x256xf32> to vector<16x256xf32>
    %34 = vector.shape_cast %27 : vector<16x256xf32> to vector<1x16x256xf32>
    tpu.vector_store %arg9[%c0_20, %c0_21, %c0_22], %34 {strides = array<i32>} : memref<4x16x256xf32, #tpu.memory_space<vmem>>, vector<1x16x256xf32>,
    %c4_i32 = arith.constant 4 : i32
    %35 = arith.muli %arg2, %c4_i32 : i32
    %c0_i32_23 = arith.constant 0 : i32
    %36 = arith.addi %35, %c0_i32_23 : i32
    %c10_i32 = arith.constant 10 : i32
    %37 = arith.cmpi slt, %36, %c10_i32 : i32
    %38 = arith.select %37, %27, %8 : vector<16x256xf32>
    %39 = arith.select %37, %23, %9 : vector<16x256xf32>
    %40 = vector.extract_strided_slice %6 {offsets = [16, 0], sizes = [16, 256], strides = [1, 1]} : vector<64x256xf32> to vector<16x256xf32>
    %cst_24 = arith.constant 0.000000e+00 : f32
    %41 = vector.broadcast %cst_24 : f32 to vector<16x256xf32>
    %42 = arith.cmpf oeq, %39, %41 : vector<16x256xf32>
    %43 = vector.broadcast %7 : vector<1x256xf32> to vector<16x256xf32>
    %44 = arith.mulf %38, %43 : vector<16x256xf32>
    %cst_25 = arith.constant 0.000000e+00 : f32
    %45 = vector.broadcast %cst_25 : f32 to vector<16x256xf32>
    %46 = arith.select %42, %44, %45 : vector<16x256xi1>, vector<16x256xf32>
    %47 = arith.addf %46, %40 : vector<16x256xf32>
    %cst_26 = arith.constant 3.000000e-01 : f32
    %48 = vector.broadcast %cst_26 : f32 to vector<16x256xf32>
    %49 = arith.subf %47, %48 : vector<16x256xf32>
    %cst_27 = arith.constant 0.000000e+00 : f32
    %50 = vector.broadcast %cst_27 : f32 to vector<16x256xf32>
    %51 = arith.cmpf ogt, %49, %50 : vector<16x256xf32>
    %52 = arith.extui %51 : vector<16x256xi1> to vector<16x256xi32>
    %53 = arith.sitofp %52 : vector<16x256xi32> to vector<16x256xf32>
    %cst_28 = arith.constant 3.000000e-01 : f32
    %54 = vector.broadcast %cst_28 : f32 to vector<16x256xf32>
    %55 = arith.cmpf olt, %47, %54 : vector<16x256xf32>
    %cst_29 = arith.constant 0.000000e+00 : f32
    %56 = vector.broadcast %cst_29 : f32 to vector<16x256xf32>
    %57 = arith.select %55, %47, %56 : vector<16x256xi1>, vector<16x256xf32>
    %58 = arith.truncf %53 : vector<16x256xf32> to vector<16x256xbf16>
    %c1 = arith.constant 1 : index
    %c0_30 = arith.constant 0 : index
    %c0_31 = arith.constant 0 : index
    %59 = vector.load %arg8[%c1, %c0_30, %c0_31] : memref<4x16x256xbf16, #tpu.memory_space<vmem>>, vector<1x16x256xbf16>
    %60 = vector.shape_cast %59 : vector<1x16x256xbf16> to vector<16x256xbf16>
    %61 = vector.shape_cast %58 : vector<16x256xbf16> to vector<1x16x256xbf16>
    tpu.vector_store %arg8[%c1, %c0_30, %c0_31], %61 {strides = array<i32>} : memref<4x16x256xbf16, #tpu.memory_space<vmem>>, vector<1x16x256xbf16>,
    %c1_32 = arith.constant 1 : index
    %c0_33 = arith.constant 0 : index
    %c0_34 = arith.constant 0 : index
    %62 = vector.load %arg9[%c1_32, %c0_33, %c0_34] : memref<4x16x256xf32, #tpu.memory_space<vmem>>, vector<1x16x256xf32>
    %63 = vector.shape_cast %62 : vector<1x16x256xf32> to vector<16x256xf32>
    %64 = vector.shape_cast %57 : vector<16x256xf32> to vector<1x16x256xf32>
    tpu.vector_store %arg9[%c1_32, %c0_33, %c0_34], %64 {strides = array<i32>} : memref<4x16x256xf32, #tpu.memory_space<vmem>>, vector<1x16x256xf32>,
    %c4_i32_35 = arith.constant 4 : i32
    %65 = arith.muli %arg2, %c4_i32_35 : i32
    %c1_i32 = arith.constant 1 : i32
    %66 = arith.addi %65, %c1_i32 : i32
    %c10_i32_36 = arith.constant 10 : i32
    %67 = arith.cmpi slt, %66, %c10_i32_36 : i32
    %68 = arith.select %67, %57, %38 : vector<16x256xf32>
    %69 = arith.select %67, %53, %39 : vector<16x256xf32>
    %70 = vector.extract_strided_slice %6 {offsets = [32, 0], sizes = [16, 256], strides = [1, 1]} : vector<64x256xf32> to vector<16x256xf32>
    %cst_37 = arith.constant 0.000000e+00 : f32
    %71 = vector.broadcast %cst_37 : f32 to vector<16x256xf32>
    %72 = arith.cmpf oeq, %69, %71 : vector<16x256xf32>
    %73 = vector.broadcast %7 : vector<1x256xf32> to vector<16x256xf32>
    %74 = arith.mulf %68, %73 : vector<16x256xf32>
    %cst_38 = arith.constant 0.000000e+00 : f32
    %75 = vector.broadcast %cst_38 : f32 to vector<16x256xf32>
    %76 = arith.select %72, %74, %75 : vector<16x256xi1>, vector<16x256xf32>
    %77 = arith.addf %76, %70 : vector<16x256xf32>
    %cst_39 = arith.constant 3.000000e-01 : f32
    %78 = vector.broadcast %cst_39 : f32 to vector<16x256xf32>
    %79 = arith.subf %77, %78 : vector<16x256xf32>
    %cst_40 = arith.constant 0.000000e+00 : f32
    %80 = vector.broadcast %cst_40 : f32 to vector<16x256xf32>
    %81 = arith.cmpf ogt, %79, %80 : vector<16x256xf32>
    %82 = arith.extui %81 : vector<16x256xi1> to vector<16x256xi32>
    %83 = arith.sitofp %82 : vector<16x256xi32> to vector<16x256xf32>
    %cst_41 = arith.constant 3.000000e-01 : f32
    %84 = vector.broadcast %cst_41 : f32 to vector<16x256xf32>
    %85 = arith.cmpf olt, %77, %84 : vector<16x256xf32>
    %cst_42 = arith.constant 0.000000e+00 : f32
    %86 = vector.broadcast %cst_42 : f32 to vector<16x256xf32>
    %87 = arith.select %85, %77, %86 : vector<16x256xi1>, vector<16x256xf32>
    %88 = arith.truncf %83 : vector<16x256xf32> to vector<16x256xbf16>
    %c2 = arith.constant 2 : index
    %c0_43 = arith.constant 0 : index
    %c0_44 = arith.constant 0 : index
    %89 = vector.load %arg8[%c2, %c0_43, %c0_44] : memref<4x16x256xbf16, #tpu.memory_space<vmem>>, vector<1x16x256xbf16>
    %90 = vector.shape_cast %89 : vector<1x16x256xbf16> to vector<16x256xbf16>
    %91 = vector.shape_cast %88 : vector<16x256xbf16> to vector<1x16x256xbf16>
    tpu.vector_store %arg8[%c2, %c0_43, %c0_44], %91 {strides = array<i32>} : memref<4x16x256xbf16, #tpu.memory_space<vmem>>, vector<1x16x256xbf16>,
    %c2_45 = arith.constant 2 : index
    %c0_46 = arith.constant 0 : index
    %c0_47 = arith.constant 0 : index
    %92 = vector.load %arg9[%c2_45, %c0_46, %c0_47] : memref<4x16x256xf32, #tpu.memory_space<vmem>>, vector<1x16x256xf32>
    %93 = vector.shape_cast %92 : vector<1x16x256xf32> to vector<16x256xf32>
    %94 = vector.shape_cast %87 : vector<16x256xf32> to vector<1x16x256xf32>
    tpu.vector_store %arg9[%c2_45, %c0_46, %c0_47], %94 {strides = array<i32>} : memref<4x16x256xf32, #tpu.memory_space<vmem>>, vector<1x16x256xf32>,
    %c4_i32_48 = arith.constant 4 : i32
    %95 = arith.muli %arg2, %c4_i32_48 : i32
    %c2_i32 = arith.constant 2 : i32
    %96 = arith.addi %95, %c2_i32 : i32
    %c10_i32_49 = arith.constant 10 : i32
    %97 = arith.cmpi slt, %96, %c10_i32_49 : i32
    %98 = arith.select %97, %87, %68 : vector<16x256xf32>
    %99 = arith.select %97, %83, %69 : vector<16x256xf32>
    %100 = vector.extract_strided_slice %6 {offsets = [48, 0], sizes = [16, 256], strides = [1, 1]} : vector<64x256xf32> to vector<16x256xf32>
    %cst_50 = arith.constant 0.000000e+00 : f32
    %101 = vector.broadcast %cst_50 : f32 to vector<16x256xf32>
    %102 = arith.cmpf oeq, %99, %101 : vector<16x256xf32>
    %103 = vector.broadcast %7 : vector<1x256xf32> to vector<16x256xf32>
    %104 = arith.mulf %98, %103 : vector<16x256xf32>
    %cst_51 = arith.constant 0.000000e+00 : f32
    %105 = vector.broadcast %cst_51 : f32 to vector<16x256xf32>
    %106 = arith.select %102, %104, %105 : vector<16x256xi1>, vector<16x256xf32>
    %107 = arith.addf %106, %100 : vector<16x256xf32>
    %cst_52 = arith.constant 3.000000e-01 : f32
    %108 = vector.broadcast %cst_52 : f32 to vector<16x256xf32>
    %109 = arith.subf %107, %108 : vector<16x256xf32>
    %cst_53 = arith.constant 0.000000e+00 : f32
    %110 = vector.broadcast %cst_53 : f32 to vector<16x256xf32>
    %111 = arith.cmpf ogt, %109, %110 : vector<16x256xf32>
    %112 = arith.extui %111 : vector<16x256xi1> to vector<16x256xi32>
    %113 = arith.sitofp %112 : vector<16x256xi32> to vector<16x256xf32>
    %cst_54 = arith.constant 3.000000e-01 : f32
    %114 = vector.broadcast %cst_54 : f32 to vector<16x256xf32>
    %115 = arith.cmpf olt, %107, %114 : vector<16x256xf32>
    %cst_55 = arith.constant 0.000000e+00 : f32
    %116 = vector.broadcast %cst_55 : f32 to vector<16x256xf32>
    %117 = arith.select %115, %107, %116 : vector<16x256xi1>, vector<16x256xf32>
    %118 = arith.truncf %113 : vector<16x256xf32> to vector<16x256xbf16>
    %c3 = arith.constant 3 : index
    %c0_56 = arith.constant 0 : index
    %c0_57 = arith.constant 0 : index
    %119 = vector.load %arg8[%c3, %c0_56, %c0_57] : memref<4x16x256xbf16, #tpu.memory_space<vmem>>, vector<1x16x256xbf16>
    %120 = vector.shape_cast %119 : vector<1x16x256xbf16> to vector<16x256xbf16>
    %121 = vector.shape_cast %118 : vector<16x256xbf16> to vector<1x16x256xbf16>
    tpu.vector_store %arg8[%c3, %c0_56, %c0_57], %121 {strides = array<i32>} : memref<4x16x256xbf16, #tpu.memory_space<vmem>>, vector<1x16x256xbf16>,
    %c3_58 = arith.constant 3 : index
    %c0_59 = arith.constant 0 : index
    %c0_60 = arith.constant 0 : index
    %122 = vector.load %arg9[%c3_58, %c0_59, %c0_60] : memref<4x16x256xf32, #tpu.memory_space<vmem>>, vector<1x16x256xf32>
    %123 = vector.shape_cast %122 : vector<1x16x256xf32> to vector<16x256xf32>
    %124 = vector.shape_cast %117 : vector<16x256xf32> to vector<1x16x256xf32>
    tpu.vector_store %arg9[%c3_58, %c0_59, %c0_60], %124 {strides = array<i32>} : memref<4x16x256xf32, #tpu.memory_space<vmem>>, vector<1x16x256xf32>,
    %c4_i32_61 = arith.constant 4 : i32
    %125 = arith.muli %arg2, %c4_i32_61 : i32
    %c3_i32 = arith.constant 3 : i32
    %126 = arith.addi %125, %c3_i32 : i32
    %c10_i32_62 = arith.constant 10 : i32
    %127 = arith.cmpi slt, %126, %c10_i32_62 : i32
    %128 = arith.select %127, %117, %98 : vector<16x256xf32>
    %129 = arith.select %127, %113, %99 : vector<16x256xf32>
    %c0_63 = arith.constant 0 : index
    %c0_64 = arith.constant 0 : index
    %130 = vector.load %arg11[%c0_63, %c0_64] : memref<16x256xf32, #tpu.memory_space<vmem>>, vector<16x256xf32>
    tpu.vector_store %arg11[%c0_63, %c0_64], %128 {strides = array<i32>} : memref<16x256xf32, #tpu.memory_space<vmem>>, vector<16x256xf32>,
    %c0_65 = arith.constant 0 : index
    %c0_66 = arith.constant 0 : index
    %131 = vector.load %arg12[%c0_65, %c0_66] : memref<16x256xf32, #tpu.memory_space<vmem>>, vector<16x256xf32>
    tpu.vector_store %arg12[%c0_65, %c0_66], %129 {strides = array<i32>} : memref<16x256xf32, #tpu.memory_space<vmem>>, vector<16x256xf32>,
    %c2_i32_67 = arith.constant 2 : i32
    %132 = arith.cmpi eq, %arg2, %c2_i32_67 : i32
    %133 = arith.extui %132 : i1 to i32
    %c0_i32_68 = arith.constant 0 : i32
    %134 = arith.cmpi ne, %133, %c0_i32_68 : i32
    scf.if %134 {
      %c0_69 = arith.constant 0 : index
      %c0_70 = arith.constant 0 : index
      %135 = vector.load %arg10[%c0_69, %c0_70] : memref<16x256xf32, #tpu.memory_space<vmem>>, vector<16x256xf32>
      tpu.vector_store %arg10[%c0_69, %c0_70], %128 {strides = array<i32>} : memref<16x256xf32, #tpu.memory_space<vmem>>, vector<16x256xf32>,
    } else {
    }
    return
  }
  func.func @transform_0(%arg0: i32, %arg1: i32, %arg2: i32) -> (i32, i32, i32) {
    %c0_i32 = arith.constant 0 : i32
    %c0_i32_0 = arith.constant 0 : i32
    return %arg2, %arg1, %c0_i32 : i32, i32, i32
  }
  func.func @transform_1(%arg0: i32, %arg1: i32, %arg2: i32) -> (i32, i32) {
    %c0_i32 = arith.constant 0 : i32
    %c0_i32_0 = arith.constant 0 : i32
    return %c0_i32, %arg0 : i32, i32
  }
  func.func @transform_2(%arg0: i32, %arg1: i32, %arg2: i32) -> (i32, i32) {
    %c0_i32 = arith.constant 0 : i32
    return %arg1, %arg0 : i32, i32
  }
  func.func @transform_3(%arg0: i32, %arg1: i32, %arg2: i32) -> (i32, i32) {
    %c0_i32 = arith.constant 0 : i32
    return %arg1, %arg0 : i32, i32
  }
  func.func @transform_4(%arg0: i32, %arg1: i32, %arg2: i32) -> (i32, i32) {
    %c0_i32 = arith.constant 0 : i32
    %c0_i32_0 = arith.constant 0 : i32
    return %c0_i32, %arg0 : i32, i32
  }
  func.func @transform_5(%arg0: i32, %arg1: i32, %arg2: i32) -> (i32, i32, i32) {
    %c0_i32 = arith.constant 0 : i32
    return %arg2, %arg1, %arg0 : i32, i32, i32
  }
  func.func @transform_6(%arg0: i32, %arg1: i32, %arg2: i32) -> (i32, i32, i32) {
    %c0_i32 = arith.constant 0 : i32
    return %arg2, %arg1, %arg0 : i32, i32, i32
  }
  func.func @transform_7(%arg0: i32, %arg1: i32, %arg2: i32) -> (i32, i32) {
    %c0_i32 = arith.constant 0 : i32
    return %arg1, %arg0 : i32, i32
  }
}

</mosaic_0001>

<llo_original>
// kernel: tpu_custom_call.1
$region0: #{tpu_custom_call.1}
  #allocation0 [shape = 'u32[]', space=smem, size = 0x4, offset = 0x4, fixed_abs, tag = 'smem constant byte address 0x4 - core index']
  #allocation1 [shape = 'u32[144,128]{1,0:T(1,128)}', space=vmem, size = 0x12000, scoped, tag = 'internal scratch']
  #allocation2 [shape = 'f32[16,256]{1,0:T(8,128)}', space=vmem, size = 0x4000, scoped, tag = 'scratch operand']
  #allocation3 [shape = 'f32[16,256]{1,0:T(8,128)}', space=vmem, size = 0x4000, scoped, tag = 'scratch operand']
  %s0 = inlined_call_operand.hbm [shape: bf16[12,16,256], index: 0, kind: input, shape index: {}]
  %s1 = inlined_call_operand.hbm [shape: bf16[256,512], index: 1, kind: input, shape index: {}]
  %s2 = inlined_call_operand.hbm [shape: f32[16,512], index: 2, kind: input, shape index: {}]
  %s3 = inlined_call_operand.hbm [shape: f32[16,512], index: 3, kind: input, shape index: {}]
  %s4 = inlined_call_operand.vmem [shape: f32[1,512], index: 4, kind: input, shape index: {}]
  %s5 = inlined_call_operand.hbm [shape: bf16[12,16,512], index: 5, kind: output, shape index: {0}]
  %s6 = inlined_call_operand.hbm [shape: f32[12,16,512], index: 6, kind: output, shape index: {1}]
  %s7 = inlined_call_operand.hbm [shape: f32[16,512], index: 7, kind: output, shape index: {2}]
  %8 = xla_tuple %s5, %s6, %s7
  %s9 = sld [smem:[#allocation0]]
  $region93: #{tpu_custom_call.1} parent=0
    _
  %s11 = ssub.s32 1, %s9
  %s12 = scalar_select 0, %s11, %s9
  $region1: #{tpu_custom_call.1} parent=0
    #allocation4 [shape = 'u8[65536]{0}', space=vmem, size = 0x10000, scoped, tag = 'input window, operand 0']
    #allocation5 [shape = 's32[2]{0}', space=sflag, size = 0x8, scoped, tag = 'scoped memory for tpu_custom_call.1']
    #allocation6 [shape = 's32[2]{0}', space=sflag, size = 0x8, scoped, tag = 'scoped memory for tpu_custom_call.1']
    #allocation7 [shape = 'u8[262144]{0}', space=vmem, size = 0x40000, scoped, tag = 'input window, operand 1']
    #allocation8 [shape = 's32[2]{0}', space=sflag, size = 0x8, scoped, tag = 'scoped memory for tpu_custom_call.1']
    #allocation9 [shape = 'u8[32768]{0}', space=vmem, size = 0x8000, scoped, tag = 'input window, operand 2']
    #allocation10 [shape = 'u8[32768]{0}', space=vmem, size = 0x8000, scoped, tag = 'input window, operand 3']
    #allocation11 [shape = 's32[2]{0}', space=sflag, size = 0x8, scoped, tag = 'scoped memory for tpu_custom_call.1']
    #allocation12 [shape = 'u8[65536]{0}', space=vmem, size = 0x10000, scoped, tag = 'output window, operand 0']
    #allocation13 [shape = 'u8[131072]{0}', space=vmem, size = 0x20000, scoped, tag = 'output window, operand 1']
    #allocation14 [shape = 's32[2]{0}', space=sflag, size = 0x8, scoped, tag = 'scoped memory for tpu_custom_call.1']
    #allocation15 [shape = 'u8[32768]{0}', space=vmem, size = 0x8000, scoped, tag = 'output window, operand 2']
    %13 = vsyncpa [#allocation5], 0
    %s14 = scalar_lea.sflag [#allocation5], 1
    %15 = vsyncpa %s14, 0
    %16 = vsyncpa [#allocation8], 0
    %s17 = scalar_lea.sflag [#allocation8], 1
    %18 = vsyncpa %s17, 0
    %19 = vsyncpa [#allocation11], 0
    %s20 = scalar_lea.sflag [#allocation11], 1
    %21 = vsyncpa %s20, 0
    %22 = vsyncpa [#allocation6], 0
    %s23 = scalar_lea.sflag [#allocation6], 1
    %24 = vsyncpa %s23, 0
    %25 = vsyncpa [#allocation14], 0
    %s26 = scalar_lea.sflag [#allocation14], 1
    %27 = vsyncpa %s26, 0
    loop: start=0, step=1, limit=8
    $region2: #{tpu_custom_call.1} parent=1 // loop_pre_header
      _
    $region3: #{tpu_custom_call.1} parent=1 // loop_header
      %s29 = sphi 0, %s33
      %p30 = scmp.ge.s32.totalorder %s29, 8
      %s36 = sphi 0, %s55
      %s37 = sphi 0, %s51
      %s38 = sphi 0, %s47
      %s39 = sphi 0, %s36
      %s40 = sphi 0, %s37
      %s41 = sphi 0, %s38
      %s42 = sphi 0, %s39
      %s43 = sphi 0, %s40
      %s44 = sphi 0, %s41
      %s60 = sphi 0, %s62
      %s63 = sphi 0, %s60
      %s64 = sphi 0, %s63
      %s80 = sphi 0, %s64
      %s86 = sphi 0, %s88
      %s89 = sphi 0, %s86
      %s90 = sphi 0, %s89
      %s106 = sphi 0, %s90
      %s114 = sphi 0, %s116
      %s117 = sphi 0, %s114
      %s118 = sphi 0, %s117
      %s134 = sphi 0, %s118
      %s142 = sphi 0, %s144
      %s145 = sphi 0, %s142
      %s146 = sphi 0, %s145
      %s162 = sphi 0, %s146
      %s168 = sphi 0, %s170
      %s171 = sphi 0, %s168
      %s172 = sphi 0, %s171
      %s188 = sphi 0, %s172
      %s198 = sphi 0, %s200
      %s201 = sphi 0, %s198
      %s202 = sphi 0, %s201
      %s218 = sphi 0, %s202
      %s228 = sphi 0, %s230
      %s231 = sphi 0, %s228
      %s232 = sphi 0, %s231
      %s248 = sphi 0, %s232
      %s256 = sphi 0, %s258
      %s259 = sphi 0, %s256
      %s260 = sphi 0, %s259
      %s276 = sphi 0, %s260
    $region4: #{tpu_custom_call.1} parent=1 // loop_header_branch
      %32 = sbr.rel (%p30) target = $region8
    $region5: #{tpu_custom_call.1} parent=1 // loop_body
      %s34 = ssub.s32 %s29, 1
      %s35 = ssub.s32 %s29, 2
      %s45 = sadd.s32 1, %s38
      %p46 = scmp.ge.s32.totalorder %s45, 3
      %s47 = scalar_select %p46, 0, %s45
      %s48 = sadd.s32 1, %s37
      %s49 = scalar_select %p46, %s48, %s37
      %p50 = scmp.ge.s32.totalorder %s49, 1
      %s51 = scalar_select %p50, 0, %s49
      %s52 = sadd.s32 1, %s36
      %s53 = scalar_select %p50, %s52, %s36
      %p54 = scmp.ge.s32.totalorder %s53, 2
      %s55 = scalar_select %p54, 0, %s53
      %s56 = ssub.s32 %s38, %s47
      %s57 = ssub.s32 %s37, %s51
      %s58 = sor.u32 %s56, %s57
      %p59 = scmp.eq.s32.totalorder %s58, 0
      %s61 = sadd.s32 %s60, 1
      %s62 = scalar_select %p59, %s60, %s61
      %p65 = pneg %p59
      %p66 = scmp.eq.s32.totalorder %s29, 5
      %p67 = por %p65, %p66
      %p68 = scmp.ne.s32.totalorder %s60, %s63
      %p69 = scmp.eq.s32.totalorder %s29, 0
      %p70 = por %p68, %p69
      %p71 = scmp.ne.s32.totalorder %s60, %s63
      %p72 = scmp.eq.s32.totalorder %s34, 5
      %p73 = por %p71, %p72
      %p74 = scmp.ne.s32.totalorder %s63, %s64
      %p75 = scmp.eq.s32.totalorder %s34, 0
      %p76 = por %p74, %p75
      %p77 = scmp.ne.s32.totalorder %s63, %s64
      %p78 = scmp.eq.s32.totalorder %s35, 5
      %p79 = por %p77, %p78
      %p81 = scmp.ne.s32.totalorder %s64, %s80
      %p82 = scmp.eq.s32.totalorder %s35, 0
      %p83 = por %p81, %p82
      %s84 = ssub.s32 %s36, %s55
      %p85 = scmp.eq.s32.totalorder %s84, 0
      %s87 = sadd.s32 %s86, 1
      %s88 = scalar_select %p85, %s86, %s87
      %p91 = pneg %p85
      %p92 = scmp.eq.s32.totalorder %s29, 5
      %p93 = por %p91, %p92
      %p94 = scmp.ne.s32.totalorder %s86, %s89
      %p95 = scmp.eq.s32.totalorder %s29, 0
      %p96 = por %p94, %p95
      %p97 = scmp.ne.s32.totalorder %s86, %s89
      %p98 = scmp.eq.s32.totalorder %s34, 5
      %p99 = por %p97, %p98
      %p100 = scmp.ne.s32.totalorder %s89, %s90
      %p101 = scmp.eq.s32.totalorder %s34, 0
      %p102 = por %p100, %p101
      %p103 = scmp.ne.s32.totalorder %s89, %s90
      %p104 = scmp.eq.s32.totalorder %s35, 5
      %p105 = por %p103, %p104
      %p107 = scmp.ne.s32.totalorder %s90, %s106
      %p108 = scmp.eq.s32.totalorder %s35, 0
      %p109 = por %p107, %p108
      %s110 = ssub.s32 %s37, %s51
      %s111 = ssub.s32 %s36, %s55
      %s112 = sor.u32 %s110, %s111
      %p113 = scmp.eq.s32.totalorder %s112, 0
      %s115 = sadd.s32 %s114, 1
      %s116 = scalar_select %p113, %s114, %s115
      %p119 = pneg %p113
      %p120 = scmp.eq.s32.totalorder %s29, 5
      %p121 = por %p119, %p120
      %p122 = scmp.ne.s32.totalorder %s114, %s117
      %p123 = scmp.eq.s32.totalorder %s29, 0
      %p124 = por %p122, %p123
      %p125 = scmp.ne.s32.totalorder %s114, %s117
      %p126 = scmp.eq.s32.totalorder %s34, 5
      %p127 = por %p125, %p126
      %p128 = scmp.ne.s32.totalorder %s117, %s118
      %p129 = scmp.eq.s32.totalorder %s34, 0
      %p130 = por %p128, %p129
      %p131 = scmp.ne.s32.totalorder %s117, %s118
      %p132 = scmp.eq.s32.totalorder %s35, 5
      %p133 = por %p131, %p132
      %p135 = scmp.ne.s32.totalorder %s118, %s134
      %p136 = scmp.eq.s32.totalorder %s35, 0
      %p137 = por %p135, %p136
      %s138 = ssub.s32 %s37, %s51
      %s139 = ssub.s32 %s36, %s55
      %s140 = sor.u32 %s138, %s139
      %p141 = scmp.eq.s32.totalorder %s140, 0
      %s143 = sadd.s32 %s142, 1
      %s144 = scalar_select %p141, %s142, %s143
      %p147 = pneg %p141
      %p148 = scmp.eq.s32.totalorder %s29, 5
      %p149 = por %p147, %p148
      %p150 = scmp.ne.s32.totalorder %s142, %s145
      %p151 = scmp.eq.s32.totalorder %s29, 0
      %p152 = por %p150, %p151
      %p153 = scmp.ne.s32.totalorder %s142, %s145
      %p154 = scmp.eq.s32.totalorder %s34, 5
      %p155 = por %p153, %p154
      %p156 = scmp.ne.s32.totalorder %s145, %s146
      %p157 = scmp.eq.s32.totalorder %s34, 0
      %p158 = por %p156, %p157
      %p159 = scmp.ne.s32.totalorder %s145, %s146
      %p160 = scmp.eq.s32.totalorder %s35, 5
      %p161 = por %p159, %p160
      %p163 = scmp.ne.s32.totalorder %s146, %s162
      %p164 = scmp.eq.s32.totalorder %s35, 0
      %p165 = por %p163, %p164
      %s166 = ssub.s32 %s36, %s55
      %p167 = scmp.eq.s32.totalorder %s166, 0
      %s169 = sadd.s32 %s168, 1
      %s170 = scalar_select %p167, %s168, %s169
      %p173 = pneg %p167
      %p174 = scmp.eq.s32.totalorder %s29, 5
      %p175 = por %p173, %p174
      %p176 = scmp.ne.s32.totalorder %s168, %s171
      %p177 = scmp.eq.s32.totalorder %s29, 0
      %p178 = por %p176, %p177
      %p179 = scmp.ne.s32.totalorder %s168, %s171
      %p180 = scmp.eq.s32.totalorder %s34, 5
      %p181 = por %p179, %p180
      %p182 = scmp.ne.s32.totalorder %s171, %s172
      %p183 = scmp.eq.s32.totalorder %s34, 0
      %p184 = por %p182, %p183
      %p185 = scmp.ne.s32.totalorder %s171, %s172
      %p186 = scmp.eq.s32.totalorder %s35, 5
      %p187 = por %p185, %p186
      %p189 = scmp.ne.s32.totalorder %s172, %s188
      %p190 = scmp.eq.s32.totalorder %s35, 0
      %p191 = por %p189, %p190
      %s192 = ssub.s32 %s38, %s47
      %s193 = ssub.s32 %s37, %s51
      %s194 = sor.u32 %s192, %s193
      %s195 = ssub.s32 %s36, %s55
      %s196 = sor.u32 %s194, %s195
      %p197 = scmp.eq.s32.totalorder %s196, 0
      %s199 = sadd.s32 %s198, 1
      %s200 = scalar_select %p197, %s198, %s199
      %p203 = pneg %p197
      %p204 = scmp.eq.s32.totalorder %s29, 5
      %p205 = por %p203, %p204
      %p206 = scmp.ne.s32.totalorder %s198, %s201
      %p207 = scmp.eq.s32.totalorder %s29, 0
      %p208 = por %p206, %p207
      %p209 = scmp.ne.s32.totalorder %s198, %s201
      %p210 = scmp.eq.s32.totalorder %s34, 5
      %p211 = por %p209, %p210
      %p212 = scmp.ne.s32.totalorder %s201, %s202
      %p213 = scmp.eq.s32.totalorder %s34, 0
      %p214 = por %p212, %p213
      %p215 = scmp.ne.s32.totalorder %s201, %s202
      %p216 = scmp.eq.s32.totalorder %s35, 5
      %p217 = por %p215, %p216
      %p219 = scmp.ne.s32.totalorder %s202, %s218
      %p220 = scmp.eq.s32.totalorder %s35, 0
      %p221 = por %p219, %p220
      %s222 = ssub.s32 %s38, %s47
      %s223 = ssub.s32 %s37, %s51
      %s224 = sor.u32 %s222, %s223
      %s225 = ssub.s32 %s36, %s55
      %s226 = sor.u32 %s224, %s225
      %p227 = scmp.eq.s32.totalorder %s226, 0
      %s229 = sadd.s32 %s228, 1
      %s230 = scalar_select %p227, %s228, %s229
      %p233 = pneg %p227
      %p234 = scmp.eq.s32.totalorder %s29, 5
      %p235 = por %p233, %p234
      %p236 = scmp.ne.s32.totalorder %s228, %s231
      %p237 = scmp.eq.s32.totalorder %s29, 0
      %p238 = por %p236, %p237
      %p239 = scmp.ne.s32.totalorder %s228, %s231
      %p240 = scmp.eq.s32.totalorder %s34, 5
      %p241 = por %p239, %p240
      %p242 = scmp.ne.s32.totalorder %s231, %s232
      %p243 = scmp.eq.s32.totalorder %s34, 0
      %p244 = por %p242, %p243
      %p245 = scmp.ne.s32.totalorder %s231, %s232
      %p246 = scmp.eq.s32.totalorder %s35, 5
      %p247 = por %p245, %p246
      %p249 = scmp.ne.s32.totalorder %s232, %s248
      %p250 = scmp.eq.s32.totalorder %s35, 0
      %p251 = por %p249, %p250
      %s252 = ssub.s32 %s37, %s51
      %s253 = ssub.s32 %s36, %s55
      %s254 = sor.u32 %s252, %s253
      %p255 = scmp.eq.s32.totalorder %s254, 0
      %s257 = sadd.s32 %s256, 1
      %s258 = scalar_select %p255, %s256, %s257
      %p261 = pneg %p255
      %p262 = scmp.eq.s32.totalorder %s29, 5
      %p263 = por %p261, %p262
      %p264 = scmp.ne.s32.totalorder %s256, %s259
      %p265 = scmp.eq.s32.totalorder %s29, 0
      %p266 = por %p264, %p265
      %p267 = scmp.ne.s32.totalorder %s256, %s259
      %p268 = scmp.eq.s32.totalorder %s34, 5
      %p269 = por %p267, %p268
      %p270 = scmp.ne.s32.totalorder %s259, %s260
      %p271 = scmp.eq.s32.totalorder %s34, 0
      %p272 = por %p270, %p271
      %p273 = scmp.ne.s32.totalorder %s259, %s260
      %p274 = scmp.eq.s32.totalorder %s35, 5
      %p275 = por %p273, %p274
      %p277 = scmp.ne.s32.totalorder %s260, %s276
      %p278 = scmp.eq.s32.totalorder %s35, 0
      %p279 = por %p277, %p278
      %p280 = scmp.le.s32.totalorder 1, %s29
      %p281 = scmp.lt.s32.totalorder %s29, 7
      %p282 = pnand %p280, %p281
      %p283 = pneg %p282
      // Predicated region
      $region9: #{tpu_custom_call.1} parent=5 // pred_check
        _
      $region10: #{tpu_custom_call.1} parent=5 // pred_check_branch
        %285 = sbr.rel (%p282) target = $region12
      $region11: #{tpu_custom_call.1} parent=5 // pred_region
        %s286 = ssub.s32 %s29, 1
      $region12: #{tpu_custom_call.1} parent=5 // pred_fallthru
        _
      %p287 = scmp.lt.s32.totalorder %s29, 6
      // Predicated region
      $region13: #{tpu_custom_call.1} parent=5 // pred_check
        %p288 = pneg %p287
      $region14: #{tpu_custom_call.1} parent=5 // pred_check_branch
        %290 = sbr.rel (%p288) target = $region16
      $region15: #{tpu_custom_call.1} parent=5 // pred_region
        // Predicated region
        $region17: #{tpu_custom_call.1} parent=15 // pred_check
          %p291 = pneg %p70
        $region18: #{tpu_custom_call.1} parent=15 // pred_check_branch
          %293 = sbr.rel (%p291) target = $region20
        $region19: #{tpu_custom_call.1} parent=15 // pred_region
          %s294 = sand.u32 %s60, 1
          %s295 = scalar_lea.sflag [#allocation5], %s294
          %s296 = sand.u32 %s60, 1
          %s297 = smul.addr %s296, 64
          %s298 = scalar_lea.vmem [#allocation4], %s297
          %s299 = smul.u32 4, %s38
          %s300 = smul.u32 2, %s37
          %s302 = ssub.s32 1024, 1024
          %303 = vsyncadd %s295, %s302
          %s304 = smul.addr %s300, 2
          %s305 = smul.addr %s299, 4
          %s306 = sadd.s32 %s304, %s305
          %s307 = smul.addr %s306, 64
          %s308 = scalar_lea.hbm %s0, %s307
          %s309 = sshll.u32 %s298, 4
          %s310 = int_to_ptr.vmem [resolvable:$true] %s309
          %315 = dma.hbm_to_vmem [thread:$0]  %s308, 1024, %s310, %s295, 128, 128, 8
        $region20: #{tpu_custom_call.1} parent=15 // pred_fallthru
          _
        // Predicated region
        $region21: #{tpu_custom_call.1} parent=15 // pred_check
          %p316 = pneg %p96
        $region22: #{tpu_custom_call.1} parent=15 // pred_check_branch
          %318 = sbr.rel (%p316) target = $region24
        $region23: #{tpu_custom_call.1} parent=15 // pred_region
          %s319 = sand.u32 %s29, 1
          %s320 = scalar_lea.sflag [#allocation8], %s319
          %s321 = sand.u32 %s86, 1
          %s322 = smul.addr %s321, 256
          %s323 = scalar_lea.vmem [#allocation7], %s322
          %s324 = smul.u32 2, %s36
          %s326 = ssub.s32 4096, 4096
          %327 = vsyncadd %s320, %s326
          %s328 = smul.addr %s324, 64
          %s329 = scalar_lea.hbm %s1, %s328
          %s330 = sshll.u32 %s323, 4
          %s331 = int_to_ptr.vmem [resolvable:$true] %s330
          %336 = dma.hbm_to_vmem [thread:$0]  %s329, 4096, %s331, %s320, 256, 128, 8
        $region24: #{tpu_custom_call.1} parent=15 // pred_fallthru
          _
        // Predicated region
        $region25: #{tpu_custom_call.1} parent=15 // pred_check
          %p337 = pneg %p124
        $region26: #{tpu_custom_call.1} parent=15 // pred_check_branch
          %339 = sbr.rel (%p337) target = $region28
        $region27: #{tpu_custom_call.1} parent=15 // pred_region
          %s340 = sand.u32 %s29, 1
          %s341 = scalar_lea.sflag [#allocation8], %s340
          %s342 = sand.u32 %s114, 1
          %s343 = smul.addr %s342, 32
          %s344 = scalar_lea.vmem [#allocation9], %s343
          %s345 = smul.u32 2, %s37
          %s346 = smul.u32 2, %s36
          %s348 = ssub.s32 512, 512
          %349 = vsyncadd %s341, %s348
          %s350 = smul.addr %s345, 4
          %s351 = sadd.s32 %s346, %s350
          %s352 = smul.addr %s351, 128
          %s353 = scalar_lea.hbm %s2, %s352
          %s354 = sshll.u32 %s344, 4
          %s355 = int_to_ptr.vmem [resolvable:$true] %s354
          %360 = dma.hbm_to_vmem [thread:$0]  %s353, 512, %s355, %s341, 512, 256, 16
        $region28: #{tpu_custom_call.1} parent=15 // pred_fallthru
          _
        // Predicated region
        $region29: #{tpu_custom_call.1} parent=15 // pred_check
          %p361 = pneg %p152
        $region30: #{tpu_custom_call.1} parent=15 // pred_check_branch
          %363 = sbr.rel (%p361) target = $region32
        $region31: #{tpu_custom_call.1} parent=15 // pred_region
          %s364 = sand.u32 %s142, 1
          %s365 = scalar_lea.sflag [#allocation11], %s364
          %s366 = sand.u32 %s142, 1
          %s367 = smul.addr %s366, 32
          %s368 = scalar_lea.vmem [#allocation10], %s367
          %s369 = smul.u32 2, %s37
          %s370 = smul.u32 2, %s36
          %s372 = ssub.s32 512, 512
          %373 = vsyncadd %s365, %s372
          %s374 = smul.addr %s369, 4
          %s375 = sadd.s32 %s370, %s374
          %s376 = smul.addr %s375, 128
          %s377 = scalar_lea.hbm %s3, %s376
          %s378 = sshll.u32 %s368, 4
          %s379 = int_to_ptr.vmem [resolvable:$true] %s378
          %384 = dma.hbm_to_vmem [thread:$0]  %s377, 512, %s379, %s365, 512, 256, 16
        $region32: #{tpu_custom_call.1} parent=15 // pred_fallthru
          _
        // Predicated region
        $region33: #{tpu_custom_call.1} parent=15 // pred_check
          %p385 = pneg %p178
        $region34: #{tpu_custom_call.1} parent=15 // pred_check_branch
          %387 = sbr.rel (%p385) target = $region36
        $region35: #{tpu_custom_call.1} parent=15 // pred_region
          %s388 = smul.u32 2, %s36
          %p389 = scmp.lt.s32.totalorder %s388, 3
          %s390 = scalar_select %p389, %s388, 3
          %s391 = scalar_lea.vmem %s4, %s390
          %s392 = smul.u32 2, %s36
        $region36: #{tpu_custom_call.1} parent=15 // pred_fallthru
          _
      $region16: #{tpu_custom_call.1} parent=5 // pred_fallthru
        _
      %p393 = scmp.le.s32.totalorder 1, %s29
      %p394 = scmp.lt.s32.totalorder %s29, 7
      %p395 = pnand %p393, %p394
      %p396 = pneg %p395
      // Predicated region
      $region37: #{tpu_custom_call.1} parent=5 // pred_check
        _
      $region38: #{tpu_custom_call.1} parent=5 // pred_check_branch
        %398 = sbr.rel (%p395) target = $region40
      $region39: #{tpu_custom_call.1} parent=5 // pred_region
        %s399 = ssub.s32 %s29, 1
        %s400 = sand.u32 %s63, 1
        %s401 = scalar_lea.sflag [#allocation5], %s400
        %s402 = sand.u32 %s63, 1
        %s403 = smul.addr %s402, 64
        %s404 = scalar_lea.vmem [#allocation4], %s403
        // Predicated region
        $region41: #{tpu_custom_call.1} parent=39 // pred_check
          %p405 = pneg %p76
        $region42: #{tpu_custom_call.1} parent=39 // pred_check_branch
          %407 = sbr.rel (%p405) target = $region44
        $region43: #{tpu_custom_call.1} parent=39 // pred_region
          %408 = dma.done %s401, 1024
        $region44: #{tpu_custom_call.1} parent=39 // pred_fallthru
          _
        %s409 = sand.u32 %s34, 1
        %s410 = scalar_lea.sflag [#allocation8], %s409
        %s411 = sand.u32 %s89, 1
        %s412 = smul.addr %s411, 256
        %s413 = scalar_lea.vmem [#allocation7], %s412
        // Predicated region
        $region45: #{tpu_custom_call.1} parent=39 // pred_check
          %p414 = pneg %p102
        $region46: #{tpu_custom_call.1} parent=39 // pred_check_branch
          %416 = sbr.rel (%p414) target = $region48
        $region47: #{tpu_custom_call.1} parent=39 // pred_region
          %417 = dma.done %s410, 4096
        $region48: #{tpu_custom_call.1} parent=39 // pred_fallthru
          _
        %s418 = sand.u32 %s34, 1
        %s419 = scalar_lea.sflag [#allocation8], %s418
        %s420 = sand.u32 %s117, 1
        %s421 = smul.addr %s420, 32
        %s422 = scalar_lea.vmem [#allocation9], %s421
        // Predicated region
        $region49: #{tpu_custom_call.1} parent=39 // pred_check
          %p423 = pneg %p130
        $region50: #{tpu_custom_call.1} parent=39 // pred_check_branch
          %425 = sbr.rel (%p423) target = $region52
        $region51: #{tpu_custom_call.1} parent=39 // pred_region
          %426 = dma.done %s419, 512
        $region52: #{tpu_custom_call.1} parent=39 // pred_fallthru
          _
        %s427 = sand.u32 %s145, 1
        %s428 = scalar_lea.sflag [#allocation11], %s427
        %s429 = sand.u32 %s145, 1
        %s430 = smul.addr %s429, 32
        %s431 = scalar_lea.vmem [#allocation10], %s430
        // Predicated region
        $region53: #{tpu_custom_call.1} parent=39 // pred_check
          %p432 = pneg %p158
        $region54: #{tpu_custom_call.1} parent=39 // pred_check_branch
          %434 = sbr.rel (%p432) target = $region56
        $region55: #{tpu_custom_call.1} parent=39 // pred_region
          %435 = dma.done %s428, 512
        $region56: #{tpu_custom_call.1} parent=39 // pred_fallthru
          _
        %s436 = sand.u32 %s63, 1
        %s437 = scalar_lea.sflag [#allocation5], %s436
        %s438 = sand.u32 %s63, 1
        %s439 = smul.addr %s438, 64
        %s440 = scalar_lea.vmem [#allocation4], %s439
        %p441 = pneg %p76
        %p442 = pneg %p73
        %s443 = sand.u32 %s34, 1
        %s444 = scalar_lea.sflag [#allocation8], %s443
        %s445 = sand.u32 %s89, 1
        %s446 = smul.addr %s445, 256
        %s447 = scalar_lea.vmem [#allocation7], %s446
        %p448 = pneg %p102
        %p449 = pneg %p99
        %s450 = sand.u32 %s34, 1
        %s451 = scalar_lea.sflag [#allocation8], %s450
        %s452 = sand.u32 %s117, 1
        %s453 = smul.addr %s452, 32
        %s454 = scalar_lea.vmem [#allocation9], %s453
        %p455 = pneg %p130
        %p456 = pneg %p127
        %s457 = sand.u32 %s145, 1
        %s458 = scalar_lea.sflag [#allocation11], %s457
        %s459 = sand.u32 %s145, 1
        %s460 = smul.addr %s459, 32
        %s461 = scalar_lea.vmem [#allocation10], %s460
        %p462 = pneg %p158
        %p463 = pneg %p155
        %s464 = smul.u32 2, %s39
        %p465 = scmp.lt.s32.totalorder %s464, 3
        %s466 = scalar_select %p465, %s464, 3
        %s467 = scalar_lea.vmem %s4, %s466
        %p468 = pneg %p184
        %p469 = pneg %p181
        %p470 = pneg %p214
        %p471 = pneg %p211
        %s472 = sand.u32 %s201, 1
        %s473 = scalar_lea.sflag [#allocation6], %s472
        %s474 = sand.u32 %s201, 1
        %s475 = smul.addr %s474, 64
        %s476 = scalar_lea.vmem [#allocation12], %s475
        %p477 = pneg %p244
        %p478 = pneg %p241
        %s479 = sand.u32 %s34, 1
        %s480 = scalar_lea.sflag [#allocation14], %s479
        %s481 = sand.u32 %s231, 1
        %s482 = smul.addr %s481, 128
        %s483 = scalar_lea.vmem [#allocation13], %s482
        %p484 = pneg %p272
        %p485 = pneg %p269
        %s486 = sand.u32 %s34, 1
        %s487 = scalar_lea.sflag [#allocation14], %s486
        %s488 = sand.u32 %s259, 1
        %s489 = smul.addr %s488, 32
        %s490 = scalar_lea.vmem [#allocation15], %s489
        %s491 = smul.u32 4, %s41
        %s492 = smul.u32 2, %s40
        %s493 = smul.u32 2, %s39
        %s494 = smul.u32 2, %s40
        %s495 = smul.u32 2, %s39
        %s496 = smul.u32 2, %s40
        %s497 = smul.u32 2, %s39
        %s498 = smul.u32 2, %s39
        %p499 = scmp.lt.s32.totalorder %s498, 3
        %s500 = scalar_select %p499, %s498, 3
        %s501 = scalar_lea.vmem %s4, %s500
        %s502 = smul.u32 2, %s39
        %s503 = smul.u32 4, %s41
        %s504 = smul.u32 2, %s40
        %s505 = smul.u32 2, %s39
        %s506 = smul.u32 4, %s41
        %s507 = smul.u32 2, %s40
        %s508 = smul.u32 2, %s39
        %s509 = smul.u32 2, %s40
        %s510 = smul.u32 2, %s39
        %p511 = scmp.eq.s32.totalorder %s41, 0
        // Predicated region
        $region57: #{tpu_custom_call.1} parent=39 // pred_check
          %p512 = pneg %p511
        $region58: #{tpu_custom_call.1} parent=39 // pred_check_branch
          %514 = sbr.rel (%p512) target = $region60
        $region59: #{tpu_custom_call.1} parent=39 // pred_region
          %v515 = vld [vmem:[%s422] sm:$0xff]
          %v516 = vld [vmem:[%s422 + $0x8] sm:$0xff]
          %v517 = vld [vmem:[%s422 + $0x10] sm:$0xff]
          %v518 = vld [vmem:[%s422 + $0x18] sm:$0xff]
          %519 = vst [vmem:[#allocation2] sm:$0xff] %v515
          %520 = vst [vmem:[#allocation2 + $0x8] sm:$0xff] %v516
          %521 = vst [vmem:[#allocation2 + $0x10] sm:$0xff] %v517
          %522 = vst [vmem:[#allocation2 + $0x18] sm:$0xff] %v518
          %v523 = vld [vmem:[%s431] sm:$0xff]
          %v524 = vld [vmem:[%s431 + $0x8] sm:$0xff]
          %v525 = vld [vmem:[%s431 + $0x10] sm:$0xff]
          %v526 = vld [vmem:[%s431 + $0x18] sm:$0xff]
          %527 = vst [vmem:[#allocation3] sm:$0xff] %v523
          %528 = vst [vmem:[#allocation3 + $0x8] sm:$0xff] %v524
          %529 = vst [vmem:[#allocation3 + $0x10] sm:$0xff] %v525
          %530 = vst [vmem:[#allocation3 + $0x18] sm:$0xff] %v526
        $region60: #{tpu_custom_call.1} parent=39 // pred_fallthru
          _
        %v531 = vld [vmem:[%s404] sm:$0xff]
        %v532 = vld [vmem:[%s404 + $0x8] sm:$0xff]
        %v533 = vld [vmem:[%s404 + $0x10] sm:$0xff]
        %v534 = vld [vmem:[%s404 + $0x18] sm:$0xff]
        %v535 = vld [vmem:[%s404 + $0x20] sm:$0xff]
        %v536 = vld [vmem:[%s404 + $0x28] sm:$0xff]
        %v537 = vld [vmem:[%s404 + $0x30] sm:$0xff]
        %v538 = vld [vmem:[%s404 + $0x38] sm:$0xff]
        %v539 = vld [vmem:[%s413] sm:$0xff]
        %v540 = vld [vmem:[%s413 + $0x8] sm:$0xff]
        %v541 = vld [vmem:[%s413 + $0x10] sm:$0xff]
        %v542 = vld [vmem:[%s413 + $0x18] sm:$0xff]
        %v543 = vld [vmem:[%s413 + $0x20] sm:$0xff]
        %v544 = vld [vmem:[%s413 + $0x28] sm:$0xff]
        %v545 = vld [vmem:[%s413 + $0x30] sm:$0xff]
        %v546 = vld [vmem:[%s413 + $0x38] sm:$0xff]
        %v547 = vld [vmem:[%s413 + $0x40] sm:$0xff]
        %v548 = vld [vmem:[%s413 + $0x48] sm:$0xff]
        %v549 = vld [vmem:[%s413 + $0x50] sm:$0xff]
        %v550 = vld [vmem:[%s413 + $0x58] sm:$0xff]
        %v551 = vld [vmem:[%s413 + $0x60] sm:$0xff]
        %v552 = vld [vmem:[%s413 + $0x68] sm:$0xff]
        %v553 = vld [vmem:[%s413 + $0x70] sm:$0xff]
        %v554 = vld [vmem:[%s413 + $0x78] sm:$0xff]
        %v555 = vld [vmem:[%s413 + $0x80] sm:$0xff]
        %v556 = vld [vmem:[%s413 + $0x88] sm:$0xff]
        %v557 = vld [vmem:[%s413 + $0x90] sm:$0xff]
        %v558 = vld [vmem:[%s413 + $0x98] sm:$0xff]
        %v559 = vld [vmem:[%s413 + $0xa0] sm:$0xff]
        %v560 = vld [vmem:[%s413 + $0xa8] sm:$0xff]
        %v561 = vld [vmem:[%s413 + $0xb0] sm:$0xff]
        %v562 = vld [vmem:[%s413 + $0xb8] sm:$0xff]
        %v563 = vld [vmem:[%s413 + $0xc0] sm:$0xff]
        %v564 = vld [vmem:[%s413 + $0xc8] sm:$0xff]
        %v565 = vld [vmem:[%s413 + $0xd0] sm:$0xff]
        %v566 = vld [vmem:[%s413 + $0xd8] sm:$0xff]
        %v567 = vld [vmem:[%s413 + $0xe0] sm:$0xff]
        %v568 = vld [vmem:[%s413 + $0xe8] sm:$0xff]
        %v569 = vld [vmem:[%s413 + $0xf0] sm:$0xff]
        %v570 = vld [vmem:[%s413 + $0xf8] sm:$0xff]
        %v579 = vunpack.c.l.b16 %v531
        %v580 = vunpack.c.h.b16 %v531
        %v581 = vunpack.c.l.b16 %v532
        %v582 = vunpack.c.h.b16 %v532
        %v583 = vunpack.c.l.b16 %v533
        %v584 = vunpack.c.h.b16 %v533
        %v585 = vunpack.c.l.b16 %v534
        %v586 = vunpack.c.h.b16 %v534
        %v587 = vunpack.c.l.b16 %v535
        %v588 = vunpack.c.h.b16 %v535
        %v589 = vunpack.c.l.b16 %v536
        %v590 = vunpack.c.h.b16 %v536
        %v591 = vunpack.c.l.b16 %v537
        %v592 = vunpack.c.h.b16 %v537
        %v593 = vunpack.c.l.b16 %v538
        %v594 = vunpack.c.h.b16 %v538
        %v595 = vpack.c.b16 %v581, %v579
        %v596 = vpack.c.b16 %v582, %v580
        %v597 = vpack.c.b16 %v585, %v583
        %v598 = vpack.c.b16 %v586, %v584
        %v599 = vpack.c.b16 %v589, %v587
        %v600 = vpack.c.b16 %v590, %v588
        %v601 = vpack.c.b16 %v593, %v591
        %v602 = vpack.c.b16 %v594, %v592
        %v643 = vunpack.c.l.b16 %v539
        %v644 = vunpack.c.h.b16 %v539
        %v645 = vunpack.c.l.b16 %v540
        %v646 = vunpack.c.h.b16 %v540
        %v647 = vunpack.c.l.b16 %v541
        %v648 = vunpack.c.h.b16 %v541
        %v649 = vunpack.c.l.b16 %v542
        %v650 = vunpack.c.h.b16 %v542
        %v651 = vunpack.c.l.b16 %v543
        %v652 = vunpack.c.h.b16 %v543
        %v653 = vunpack.c.l.b16 %v544
        %v654 = vunpack.c.h.b16 %v544
        %v655 = vunpack.c.l.b16 %v545
        %v656 = vunpack.c.h.b16 %v545
        %v657 = vunpack.c.l.b16 %v546
        %v658 = vunpack.c.h.b16 %v546
        %v659 = vunpack.c.l.b16 %v547
        %v660 = vunpack.c.h.b16 %v547
        %v661 = vunpack.c.l.b16 %v548
        %v662 = vunpack.c.h.b16 %v548
        %v663 = vunpack.c.l.b16 %v549
        %v664 = vunpack.c.h.b16 %v549
        %v665 = vunpack.c.l.b16 %v550
        %v666 = vunpack.c.h.b16 %v550
        %v667 = vunpack.c.l.b16 %v551
        %v668 = vunpack.c.h.b16 %v551
        %v669 = vunpack.c.l.b16 %v552
        %v670 = vunpack.c.h.b16 %v552
        %v671 = vunpack.c.l.b16 %v553
        %v672 = vunpack.c.h.b16 %v553
        %v673 = vunpack.c.l.b16 %v554
        %v674 = vunpack.c.h.b16 %v554
        %v675 = vunpack.c.l.b16 %v555
        %v676 = vunpack.c.h.b16 %v555
        %v677 = vunpack.c.l.b16 %v556
        %v678 = vunpack.c.h.b16 %v556
        %v679 = vunpack.c.l.b16 %v557
        %v680 = vunpack.c.h.b16 %v557
        %v681 = vunpack.c.l.b16 %v558
        %v682 = vunpack.c.h.b16 %v558
        %v683 = vunpack.c.l.b16 %v559
        %v684 = vunpack.c.h.b16 %v559
        %v685 = vunpack.c.l.b16 %v560
        %v686 = vunpack.c.h.b16 %v560
        %v687 = vunpack.c.l.b16 %v561
        %v688 = vunpack.c.h.b16 %v561
        %v689 = vunpack.c.l.b16 %v562
        %v690 = vunpack.c.h.b16 %v562
        %v691 = vunpack.c.l.b16 %v563
        %v692 = vunpack.c.h.b16 %v563
        %v693 = vunpack.c.l.b16 %v564
        %v694 = vunpack.c.h.b16 %v564
        %v695 = vunpack.c.l.b16 %v565
        %v696 = vunpack.c.h.b16 %v565
        %v697 = vunpack.c.l.b16 %v566
        %v698 = vunpack.c.h.b16 %v566
        %v699 = vunpack.c.l.b16 %v567
        %v700 = vunpack.c.h.b16 %v567
        %v701 = vunpack.c.l.b16 %v568
        %v702 = vunpack.c.h.b16 %v568
        %v703 = vunpack.c.l.b16 %v569
        %v704 = vunpack.c.h.b16 %v569
        %v705 = vunpack.c.l.b16 %v570
        %v706 = vunpack.c.h.b16 %v570
        %v707 = vpack.c.b16 %v645, %v643
        %v708 = vpack.c.b16 %v646, %v644
        %v709 = vpack.c.b16 %v649, %v647
        %v710 = vpack.c.b16 %v650, %v648
        %v711 = vpack.c.b16 %v653, %v651
        %v712 = vpack.c.b16 %v654, %v652
        %v713 = vpack.c.b16 %v657, %v655
        %v714 = vpack.c.b16 %v658, %v656
        %v715 = vpack.c.b16 %v661, %v659
        %v716 = vpack.c.b16 %v662, %v660
        %v717 = vpack.c.b16 %v665, %v663
        %v718 = vpack.c.b16 %v666, %v664
        %v719 = vpack.c.b16 %v669, %v667
        %v720 = vpack.c.b16 %v670, %v668
        %v721 = vpack.c.b16 %v673, %v671
        %v722 = vpack.c.b16 %v674, %v672
        %v723 = vpack.c.b16 %v677, %v675
        %v724 = vpack.c.b16 %v678, %v676
        %v725 = vpack.c.b16 %v681, %v679
        %v726 = vpack.c.b16 %v682, %v680
        %v727 = vpack.c.b16 %v685, %v683
        %v728 = vpack.c.b16 %v686, %v684
        %v729 = vpack.c.b16 %v689, %v687
        %v730 = vpack.c.b16 %v690, %v688
        %v731 = vpack.c.b16 %v693, %v691
        %v732 = vpack.c.b16 %v694, %v692
        %v733 = vpack.c.b16 %v697, %v695
        %v734 = vpack.c.b16 %v698, %v696
        %v735 = vpack.c.b16 %v701, %v699
        %v736 = vpack.c.b16 %v702, %v700
        %v737 = vpack.c.b16 %v705, %v703
        %v738 = vpack.c.b16 %v706, %v704
        %771 = vmatprep.subr.bf16.mxu0 %v708
        %772 = vmatpush1.bf16.msra.mxu0 %v707
        %773 = vmatprep.subr.bf16.mxu0 %v710
        %774 = vmatpush1.bf16.msra.mxu0 %v709
        %775 = vmatprep.subr.bf16.mxu0 %v712
        %776 = vmatpush1.bf16.msra.mxu0 %v711
        %777 = vmatprep.subr.bf16.mxu0 %v714
        %778 = vmatpush1.bf16.msra.mxu0 %v713
        %779 = vmatprep.subr.bf16.mxu0 %v716
        %780 = vmatpush1.bf16.msra.mxu0 %v715
        %781 = vmatprep.subr.bf16.mxu0 %v718
        %782 = vmatpush1.bf16.msra.mxu0 %v717
        %783 = vmatprep.subr.bf16.mxu0 %v720
        %784 = vmatpush1.bf16.msra.mxu0 %v719
        %785 = vmatprep.subr.bf16.mxu0 %v722
        %786 = vmatpush1.bf16.msra.mxu0 %v721
        %787 = vmatprep.subr.bf16.mxu0 %v724
        %788 = vmatpush1.bf16.msra.mxu0 %v723
        %789 = vmatprep.subr.bf16.mxu0 %v726
        %790 = vmatpush1.bf16.msra.mxu0 %v725
        %791 = vmatprep.subr.bf16.mxu0 %v728
        %792 = vmatpush1.bf16.msra.mxu0 %v727
        %793 = vmatprep.subr.bf16.mxu0 %v730
        %794 = vmatpush1.bf16.msra.mxu0 %v729
        %795 = vmatprep.subr.bf16.mxu0 %v732
        %796 = vmatpush1.bf16.msra.mxu0 %v731
        %797 = vmatprep.subr.bf16.mxu0 %v734
        %798 = vmatpush1.bf16.msra.mxu0 %v733
        %799 = vmatprep.subr.bf16.mxu0 %v736
        %800 = vmatpush1.bf16.msra.mxu0 %v735
        %801 = vmatprep.subr.bf16.mxu0 %v738
        %802 = vmatpush1.bf16.msra.mxu0 %v737
        %803 = vmatprep.mubr.bf16.mxu0 %v596
        %804 = vmatmul.mubr.bf16.gmra.mrb[0].mxu0 %v595
        %v805 = vpop.f32.mrb[0].mxu0
        %v806 = vadd.f32 0.0, %v805
        %v807 = vpop.f32.mrb[0].mxu0
        %v808 = vadd.f32 0.0, %v807
        %v809 = vpop.f32.mrb[0].mxu0
        %v810 = vadd.f32 0.0, %v809
        %v811 = vpop.f32.mrb[0].mxu0
        %v812 = vadd.f32 0.0, %v811
        %813 = vmatprep.mubr.bf16.mxu0 %v598
        %814 = vmatmul.mubr.bf16.gmra.mrb[0].mxu0 %v597
        %v815 = vpop.f32.mrb[0].mxu0
        %v816 = vadd.f32 0.0, %v815
        %v817 = vpop.f32.mrb[0].mxu0
        %v818 = vadd.f32 0.0, %v817
        %v819 = vpop.f32.mrb[0].mxu0
        %v820 = vadd.f32 0.0, %v819
        %v821 = vpop.f32.mrb[0].mxu0
        %v822 = vadd.f32 0.0, %v821
        %823 = vmatprep.mubr.bf16.mxu0 %v600
        %824 = vmatmul.mubr.bf16.gmra.mrb[0].mxu0 %v599
        %v825 = vpop.f32.mrb[0].mxu0
        %v826 = vadd.f32 0.0, %v825
        %v827 = vpop.f32.mrb[0].mxu0
        %v828 = vadd.f32 0.0, %v827
        %v829 = vpop.f32.mrb[0].mxu0
        %v830 = vadd.f32 0.0, %v829
        %v831 = vpop.f32.mrb[0].mxu0
        %v832 = vadd.f32 0.0, %v831
        %833 = vmatprep.mubr.bf16.mxu0 %v602
        %834 = vmatmul.mubr.bf16.gmra.mrb[0].mxu0 %v601
        %v835 = vpop.f32.mrb[0].mxu0
        %v836 = vadd.f32 0.0, %v835
        %v837 = vpop.f32.mrb[0].mxu0
        %v838 = vadd.f32 0.0, %v837
        %v839 = vpop.f32.mrb[0].mxu0
        %v840 = vadd.f32 0.0, %v839
        %v841 = vpop.f32.mrb[0].mxu0
        %v842 = vadd.f32 0.0, %v841
        %843 = vdwg.mxu0
        %v844 = vld [vmem:[%s501] sm:$0x3]
        %v845 = vld [vmem:[#allocation2] sm:$0xff]
        %v846 = vld [vmem:[#allocation2 + $0x8] sm:$0xff]
        %v847 = vld [vmem:[#allocation2 + $0x10] sm:$0xff]
        %v848 = vld [vmem:[#allocation2 + $0x18] sm:$0xff]
        %v849 = vld [vmem:[#allocation3] sm:$0xff]
        %v850 = vld [vmem:[#allocation3 + $0x8] sm:$0xff]
        %v851 = vld [vmem:[#allocation3 + $0x10] sm:$0xff]
        %v852 = vld [vmem:[#allocation3 + $0x18] sm:$0xff]
        %vm853 = vcmp.eq.f32.partialorder %v849, 0.0
        %vm854 = vcmp.eq.f32.partialorder %v850, 0.0
        %vm855 = vcmp.eq.f32.partialorder %v851, 0.0
        %vm856 = vcmp.eq.f32.partialorder %v852, 0.0
        %v858 = vlaneseq
        %v859 = vshrl.u32 %v858, 7
        %v860 = vsub.s32 0, %v859
        %v861 = vrot.slane %v844, %v860
        %v862 = vlaneseq
        %v863 = vshrl.u32 %v862, 7
        %v864 = vsub.s32 1, %v863
        %v865 = vrot.slane %v844, %v864
        %v868 = vmul.f32 %v845, %v861
        %v869 = vmul.f32 %v846, %v865
        %v870 = vmul.f32 %v847, %v861
        %v871 = vmul.f32 %v848, %v865
        %v872 = vsel %vm853, %v868, 0.0
        %v873 = vsel %vm854, %v869, 0.0
        %v874 = vsel %vm855, %v870, 0.0
        %v875 = vsel %vm856, %v871, 0.0
        %v876 = vadd.f32 %v872, %v806
        %v877 = vadd.f32 %v873, %v808
        %v878 = vadd.f32 %v874, %v810
        %v879 = vadd.f32 %v875, %v812
        %v880 = vsub.f32 %v876, 0.3
        %v881 = vsub.f32 %v877, 0.3
        %v882 = vsub.f32 %v878, 0.3
        %v883 = vsub.f32 %v879, 0.3
        %vm884 = vcmp.gt.f32.partialorder %v880, 0.0
        %vm885 = vcmp.gt.f32.partialorder %v881, 0.0
        %vm886 = vcmp.gt.f32.partialorder %v882, 0.0
        %vm887 = vcmp.gt.f32.partialorder %v883, 0.0
        %v888 = vsel %vm884, 1, 0
        %v889 = vsel %vm885, 1, 0
        %v890 = vsel %vm886, 1, 0
        %v891 = vsel %vm887, 1, 0
        %v892 = vcvt.s32.f32 %v888
        %v893 = vcvt.s32.f32 %v889
        %v894 = vcvt.s32.f32 %v890
        %v895 = vcvt.s32.f32 %v891
        %vm896 = vcmp.lt.f32.partialorder %v876, 0.3
        %vm897 = vcmp.lt.f32.partialorder %v877, 0.3
        %vm898 = vcmp.lt.f32.partialorder %v878, 0.3
        %vm899 = vcmp.lt.f32.partialorder %v879, 0.3
        %v900 = vsel %vm896, %v876, 0.0
        %v901 = vsel %vm897, %v877, 0.0
        %v902 = vsel %vm898, %v878, 0.0
        %v903 = vsel %vm899, %v879, 0.0
        %v904 = vpack.c.bf16 %v894, %v892
        %v905 = vpack.c.bf16 %v895, %v893
        %v908 = vunpack.c.l.b16 %v904
        %v909 = vunpack.c.l.b16 %v905
        %v910 = vunpack.c.h.b16 %v904
        %v911 = vunpack.c.h.b16 %v905
        %v912 = vpack.c.b16 %v909, %v908
        %v913 = vpack.c.b16 %v911, %v910
        %916 = vst [vmem:[%s476] sm:$0xff] %v912
        %917 = vst [vmem:[%s476 + $0x8] sm:$0xff] %v913
        %918 = vst [vmem:[%s483] sm:$0xff] %v900
        %919 = vst [vmem:[%s483 + $0x8] sm:$0xff] %v901
        %920 = vst [vmem:[%s483 + $0x10] sm:$0xff] %v902
        %921 = vst [vmem:[%s483 + $0x18] sm:$0xff] %v903
        %s922 = smul.u32 %s41, 4
        %p923 = scmp.lt.s32.totalorder %s922, 10
        %s924 = scalar_select %p923, 1, 0
        %v925 = vstv %s924
        %vm926 = vcmp.eq.s32.totalorder %v925, 1
        %v927 = vsel %vm926, %v900, %v845
        %v928 = vsel %vm926, %v901, %v846
        %v929 = vsel %vm926, %v902, %v847
        %v930 = vsel %vm926, %v903, %v848
        %v931 = vsel %vm926, %v892, %v849
        %v932 = vsel %vm926, %v893, %v850
        %v933 = vsel %vm926, %v894, %v851
        %v934 = vsel %vm926, %v895, %v852
        %vm935 = vcmp.eq.f32.partialorder %v931, 0.0
        %vm936 = vcmp.eq.f32.partialorder %v932, 0.0
        %vm937 = vcmp.eq.f32.partialorder %v933, 0.0
        %vm938 = vcmp.eq.f32.partialorder %v934, 0.0
        %v939 = vmul.f32 %v927, %v861
        %v940 = vmul.f32 %v928, %v865
        %v941 = vmul.f32 %v929, %v861
        %v942 = vmul.f32 %v930, %v865
        %v943 = vsel %vm935, %v939, 0.0
        %v944 = vsel %vm936, %v940, 0.0
        %v945 = vsel %vm937, %v941, 0.0
        %v946 = vsel %vm938, %v942, 0.0
        %v947 = vadd.f32 %v943, %v816
        %v948 = vadd.f32 %v944, %v818
        %v949 = vadd.f32 %v945, %v820
        %v950 = vadd.f32 %v946, %v822
        %v951 = vsub.f32 %v947, 0.3
        %v952 = vsub.f32 %v948, 0.3
        %v953 = vsub.f32 %v949, 0.3
        %v954 = vsub.f32 %v950, 0.3
        %vm955 = vcmp.gt.f32.partialorder %v951, 0.0
        %vm956 = vcmp.gt.f32.partialorder %v952, 0.0
        %vm957 = vcmp.gt.f32.partialorder %v953, 0.0
        %vm958 = vcmp.gt.f32.partialorder %v954, 0.0
        %v959 = vsel %vm955, 1, 0
        %v960 = vsel %vm956, 1, 0
        %v961 = vsel %vm957, 1, 0
        %v962 = vsel %vm958, 1, 0
        %v963 = vcvt.s32.f32 %v959
        %v964 = vcvt.s32.f32 %v960
        %v965 = vcvt.s32.f32 %v961
        %v966 = vcvt.s32.f32 %v962
        %vm967 = vcmp.lt.f32.partialorder %v947, 0.3
        %vm968 = vcmp.lt.f32.partialorder %v948, 0.3
        %vm969 = vcmp.lt.f32.partialorder %v949, 0.3
        %vm970 = vcmp.lt.f32.partialorder %v950, 0.3
        %v971 = vsel %vm967, %v947, 0.0
        %v972 = vsel %vm968, %v948, 0.0
        %v973 = vsel %vm969, %v949, 0.0
        %v974 = vsel %vm970, %v950, 0.0
        %v975 = vpack.c.bf16 %v965, %v963
        %v976 = vpack.c.bf16 %v966, %v964
        %v979 = vunpack.c.l.b16 %v975
        %v980 = vunpack.c.l.b16 %v976
        %v981 = vunpack.c.h.b16 %v975
        %v982 = vunpack.c.h.b16 %v976
        %v983 = vpack.c.b16 %v980, %v979
        %v984 = vpack.c.b16 %v982, %v981
        %s987 = scalar_lea.vmem %s476, 16 [#allocation12]
        %988 = vst [vmem:[%s987] sm:$0xff] %v983
        %989 = vst [vmem:[%s987 + $0x8] sm:$0xff] %v984
        %s990 = scalar_lea.vmem %s483, 32 [#allocation13]
        %991 = vst [vmem:[%s990] sm:$0xff] %v971
        %992 = vst [vmem:[%s990 + $0x8] sm:$0xff] %v972
        %993 = vst [vmem:[%s990 + $0x10] sm:$0xff] %v973
        %994 = vst [vmem:[%s990 + $0x18] sm:$0xff] %v974
        %s995 = sadd.s32 %s922, 1
        %p996 = scmp.lt.s32.totalorder %s995, 10
        %s997 = scalar_select %p996, 1, 0
        %v998 = vstv %s997
        %vm999 = vcmp.eq.s32.totalorder %v998, 1
        %v1000 = vsel %vm999, %v971, %v927
        %v1001 = vsel %vm999, %v972, %v928
        %v1002 = vsel %vm999, %v973, %v929
        %v1003 = vsel %vm999, %v974, %v930
        %v1004 = vsel %vm999, %v963, %v931
        %v1005 = vsel %vm999, %v964, %v932
        %v1006 = vsel %vm999, %v965, %v933
        %v1007 = vsel %vm999, %v966, %v934
        %vm1008 = vcmp.eq.f32.partialorder %v1004, 0.0
        %vm1009 = vcmp.eq.f32.partialorder %v1005, 0.0
        %vm1010 = vcmp.eq.f32.partialorder %v1006, 0.0
        %vm1011 = vcmp.eq.f32.partialorder %v1007, 0.0
        %v1012 = vmul.f32 %v1000, %v861
        %v1013 = vmul.f32 %v1001, %v865
        %v1014 = vmul.f32 %v1002, %v861
        %v1015 = vmul.f32 %v1003, %v865
        %v1016 = vsel %vm1008, %v1012, 0.0
        %v1017 = vsel %vm1009, %v1013, 0.0
        %v1018 = vsel %vm1010, %v1014, 0.0
        %v1019 = vsel %vm1011, %v1015, 0.0
        %v1020 = vadd.f32 %v1016, %v826
        %v1021 = vadd.f32 %v1017, %v828
        %v1022 = vadd.f32 %v1018, %v830
        %v1023 = vadd.f32 %v1019, %v832
        %v1024 = vsub.f32 %v1020, 0.3
        %v1025 = vsub.f32 %v1021, 0.3
        %v1026 = vsub.f32 %v1022, 0.3
        %v1027 = vsub.f32 %v1023, 0.3
        %vm1028 = vcmp.gt.f32.partialorder %v1024, 0.0
        %vm1029 = vcmp.gt.f32.partialorder %v1025, 0.0
        %vm1030 = vcmp.gt.f32.partialorder %v1026, 0.0
        %vm1031 = vcmp.gt.f32.partialorder %v1027, 0.0
        %v1032 = vsel %vm1028, 1, 0
        %v1033 = vsel %vm1029, 1, 0
        %v1034 = vsel %vm1030, 1, 0
        %v1035 = vsel %vm1031, 1, 0
        %v1036 = vcvt.s32.f32 %v1032
        %v1037 = vcvt.s32.f32 %v1033
        %v1038 = vcvt.s32.f32 %v1034
        %v1039 = vcvt.s32.f32 %v1035
        %vm1040 = vcmp.lt.f32.partialorder %v1020, 0.3
        %vm1041 = vcmp.lt.f32.partialorder %v1021, 0.3
        %vm1042 = vcmp.lt.f32.partialorder %v1022, 0.3
        %vm1043 = vcmp.lt.f32.partialorder %v1023, 0.3
        %v1044 = vsel %vm1040, %v1020, 0.0
        %v1045 = vsel %vm1041, %v1021, 0.0
        %v1046 = vsel %vm1042, %v1022, 0.0
        %v1047 = vsel %vm1043, %v1023, 0.0
        %v1048 = vpack.c.bf16 %v1038, %v1036
        %v1049 = vpack.c.bf16 %v1039, %v1037
        %v1052 = vunpack.c.l.b16 %v1048
        %v1053 = vunpack.c.l.b16 %v1049
        %v1054 = vunpack.c.h.b16 %v1048
        %v1055 = vunpack.c.h.b16 %v1049
        %v1056 = vpack.c.b16 %v1053, %v1052
        %v1057 = vpack.c.b16 %v1055, %v1054
        %s1060 = scalar_lea.vmem %s476, 32 [#allocation12]
        %1061 = vst [vmem:[%s1060] sm:$0xff] %v1056
        %1062 = vst [vmem:[%s1060 + $0x8] sm:$0xff] %v1057
        %s1063 = scalar_lea.vmem %s483, 64 [#allocation13]
        %1064 = vst [vmem:[%s1063] sm:$0xff] %v1044
        %1065 = vst [vmem:[%s1063 + $0x8] sm:$0xff] %v1045
        %1066 = vst [vmem:[%s1063 + $0x10] sm:$0xff] %v1046
        %1067 = vst [vmem:[%s1063 + $0x18] sm:$0xff] %v1047
        %s1068 = sadd.s32 %s922, 2
        %p1069 = scmp.lt.s32.totalorder %s1068, 10
        %s1070 = scalar_select %p1069, 1, 0
        %v1071 = vstv %s1070
        %vm1072 = vcmp.eq.s32.totalorder %v1071, 1
        %v1073 = vsel %vm1072, %v1044, %v1000
        %v1074 = vsel %vm1072, %v1045, %v1001
        %v1075 = vsel %vm1072, %v1046, %v1002
        %v1076 = vsel %vm1072, %v1047, %v1003
        %v1077 = vsel %vm1072, %v1036, %v1004
        %v1078 = vsel %vm1072, %v1037, %v1005
        %v1079 = vsel %vm1072, %v1038, %v1006
        %v1080 = vsel %vm1072, %v1039, %v1007
        %vm1081 = vcmp.eq.f32.partialorder %v1077, 0.0
        %vm1082 = vcmp.eq.f32.partialorder %v1078, 0.0
        %vm1083 = vcmp.eq.f32.partialorder %v1079, 0.0
        %vm1084 = vcmp.eq.f32.partialorder %v1080, 0.0
        %v1085 = vmul.f32 %v1073, %v861
        %v1086 = vmul.f32 %v1074, %v865
        %v1087 = vmul.f32 %v1075, %v861
        %v1088 = vmul.f32 %v1076, %v865
        %v1089 = vsel %vm1081, %v1085, 0.0
        %v1090 = vsel %vm1082, %v1086, 0.0
        %v1091 = vsel %vm1083, %v1087, 0.0
        %v1092 = vsel %vm1084, %v1088, 0.0
        %v1093 = vadd.f32 %v1089, %v836
        %v1094 = vadd.f32 %v1090, %v838
        %v1095 = vadd.f32 %v1091, %v840
        %v1096 = vadd.f32 %v1092, %v842
        %v1097 = vsub.f32 %v1093, 0.3
        %v1098 = vsub.f32 %v1094, 0.3
        %v1099 = vsub.f32 %v1095, 0.3
        %v1100 = vsub.f32 %v1096, 0.3
        %vm1101 = vcmp.gt.f32.partialorder %v1097, 0.0
        %vm1102 = vcmp.gt.f32.partialorder %v1098, 0.0
        %vm1103 = vcmp.gt.f32.partialorder %v1099, 0.0
        %vm1104 = vcmp.gt.f32.partialorder %v1100, 0.0
        %v1105 = vsel %vm1101, 1, 0
        %v1106 = vsel %vm1102, 1, 0
        %v1107 = vsel %vm1103, 1, 0
        %v1108 = vsel %vm1104, 1, 0
        %v1109 = vcvt.s32.f32 %v1105
        %v1110 = vcvt.s32.f32 %v1106
        %v1111 = vcvt.s32.f32 %v1107
        %v1112 = vcvt.s32.f32 %v1108
        %vm1113 = vcmp.lt.f32.partialorder %v1093, 0.3
        %vm1114 = vcmp.lt.f32.partialorder %v1094, 0.3
        %vm1115 = vcmp.lt.f32.partialorder %v1095, 0.3
        %vm1116 = vcmp.lt.f32.partialorder %v1096, 0.3
        %v1117 = vsel %vm1113, %v1093, 0.0
        %v1118 = vsel %vm1114, %v1094, 0.0
        %v1119 = vsel %vm1115, %v1095, 0.0
        %v1120 = vsel %vm1116, %v1096, 0.0
        %v1121 = vpack.c.bf16 %v1111, %v1109
        %v1122 = vpack.c.bf16 %v1112, %v1110
        %v1125 = vunpack.c.l.b16 %v1121
        %v1126 = vunpack.c.l.b16 %v1122
        %v1127 = vunpack.c.h.b16 %v1121
        %v1128 = vunpack.c.h.b16 %v1122
        %v1129 = vpack.c.b16 %v1126, %v1125
        %v1130 = vpack.c.b16 %v1128, %v1127
        %s1133 = scalar_lea.vmem %s476, 48 [#allocation12]
        %1134 = vst [vmem:[%s1133] sm:$0xff] %v1129
        %1135 = vst [vmem:[%s1133 + $0x8] sm:$0xff] %v1130
        %s1136 = scalar_lea.vmem %s483, 96 [#allocation13]
        %1137 = vst [vmem:[%s1136] sm:$0xff] %v1117
        %1138 = vst [vmem:[%s1136 + $0x8] sm:$0xff] %v1118
        %1139 = vst [vmem:[%s1136 + $0x10] sm:$0xff] %v1119
        %1140 = vst [vmem:[%s1136 + $0x18] sm:$0xff] %v1120
        %s1141 = sadd.s32 %s922, 3
        %p1142 = scmp.lt.s32.totalorder %s1141, 10
        %s1143 = scalar_select %p1142, 1, 0
        %v1144 = vstv %s1143
        %vm1145 = vcmp.eq.s32.totalorder %v1144, 1
        %v1146 = vsel %vm1145, %v1117, %v1073
        %v1147 = vsel %vm1145, %v1118, %v1074
        %v1148 = vsel %vm1145, %v1119, %v1075
        %v1149 = vsel %vm1145, %v1120, %v1076
        %v1150 = vsel %vm1145, %v1109, %v1077
        %v1151 = vsel %vm1145, %v1110, %v1078
        %v1152 = vsel %vm1145, %v1111, %v1079
        %v1153 = vsel %vm1145, %v1112, %v1080
        %1154 = vst [vmem:[#allocation2] sm:$0xff] %v1146
        %1155 = vst [vmem:[#allocation2 + $0x8] sm:$0xff] %v1147
        %1156 = vst [vmem:[#allocation2 + $0x10] sm:$0xff] %v1148
        %1157 = vst [vmem:[#allocation2 + $0x18] sm:$0xff] %v1149
        %1158 = vst [vmem:[#allocation3] sm:$0xff] %v1150
        %1159 = vst [vmem:[#allocation3 + $0x8] sm:$0xff] %v1151
        %1160 = vst [vmem:[#allocation3 + $0x10] sm:$0xff] %v1152
        %1161 = vst [vmem:[#allocation3 + $0x18] sm:$0xff] %v1153
        %p1162 = scmp.eq.s32.totalorder %s41, 2
        // Predicated region
        $region61: #{tpu_custom_call.1} parent=39 // pred_check
          %p1163 = pneg %p1162
        $region62: #{tpu_custom_call.1} parent=39 // pred_check_branch
          %1165 = sbr.rel (%p1163) target = $region64
        $region63: #{tpu_custom_call.1} parent=39 // pred_region
          %1166 = vst [vmem:[%s490] sm:$0xff] %v1146
          %1167 = vst [vmem:[%s490 + $0x8] sm:$0xff] %v1147
          %1168 = vst [vmem:[%s490 + $0x10] sm:$0xff] %v1148
          %1169 = vst [vmem:[%s490 + $0x18] sm:$0xff] %v1149
        $region64: #{tpu_custom_call.1} parent=39 // pred_fallthru
          _
        %s1170 = sand.u32 %s201, 1
        %s1171 = scalar_lea.sflag [#allocation6], %s1170
        %s1172 = sand.u32 %s201, 1
        %s1173 = smul.addr %s1172, 64
        %s1174 = scalar_lea.vmem [#allocation12], %s1173
        %s1175 = sand.u32 %s34, 1
        %s1176 = scalar_lea.sflag [#allocation14], %s1175
        %s1177 = sand.u32 %s231, 1
        %s1178 = smul.addr %s1177, 128
        %s1179 = scalar_lea.vmem [#allocation13], %s1178
        %s1180 = sand.u32 %s34, 1
        %s1181 = scalar_lea.sflag [#allocation14], %s1180
        %s1182 = sand.u32 %s259, 1
        %s1183 = smul.addr %s1182, 32
        %s1184 = scalar_lea.vmem [#allocation15], %s1183
        // Predicated region
        $region65: #{tpu_custom_call.1} parent=39 // pred_check
          %p1185 = pneg %p211
        $region66: #{tpu_custom_call.1} parent=39 // pred_check_branch
          %1187 = sbr.rel (%p1185) target = $region68
        $region67: #{tpu_custom_call.1} parent=39 // pred_region
          %s1188 = smul.u32 4, %s41
          %s1189 = smul.u32 2, %s40
          %s1190 = smul.u32 2, %s39
          %s1192 = ssub.s32 1024, 1024
          %1193 = vsyncadd %s1171, %s1192
          %s1194 = smul.addr %s1189, 4
          %s1195 = sadd.s32 %s1190, %s1194
          %s1196 = smul.addr %s1188, 8
          %s1197 = sadd.s32 %s1195, %s1196
          %s1198 = smul.addr %s1197, 64
          %s1199 = scalar_lea.hbm %s5, %s1198
          %s1200 = sshll.u32 %s1174, 4
          %s1201 = int_to_ptr.vmem [resolvable:$true] %s1200
          %1206 = dma.vmem_to_hbm [thread:$0]  %s1201, 1024, %s1199, %s1171, 128, 256, 8
        $region68: #{tpu_custom_call.1} parent=39 // pred_fallthru
          _
        // Predicated region
        $region69: #{tpu_custom_call.1} parent=39 // pred_check
          %p1207 = pneg %p241
        $region70: #{tpu_custom_call.1} parent=39 // pred_check_branch
          %1209 = sbr.rel (%p1207) target = $region72
        $region71: #{tpu_custom_call.1} parent=39 // pred_region
          %s1210 = smul.u32 4, %s41
          %s1211 = smul.u32 2, %s40
          %s1212 = smul.u32 2, %s39
          %s1214 = ssub.s32 2048, 2048
          %1215 = vsyncadd %s1176, %s1214
          %s1216 = smul.addr %s1211, 4
          %s1217 = sadd.s32 %s1212, %s1216
          %s1218 = smul.addr %s1210, 8
          %s1219 = sadd.s32 %s1217, %s1218
          %s1220 = smul.addr %s1219, 128
          %s1221 = scalar_lea.hbm %s6, %s1220
          %s1222 = sshll.u32 %s1179, 4
          %s1223 = int_to_ptr.vmem [resolvable:$true] %s1222
          %1228 = dma.vmem_to_hbm [thread:$0]  %s1223, 2048, %s1221, %s1176, 256, 512, 16
        $region72: #{tpu_custom_call.1} parent=39 // pred_fallthru
          _
        // Predicated region
        $region73: #{tpu_custom_call.1} parent=39 // pred_check
          %p1229 = pneg %p269
        $region74: #{tpu_custom_call.1} parent=39 // pred_check_branch
          %1231 = sbr.rel (%p1229) target = $region76
        $region75: #{tpu_custom_call.1} parent=39 // pred_region
          %s1232 = smul.u32 2, %s40
          %s1233 = smul.u32 2, %s39
          %s1235 = ssub.s32 512, 512
          %1236 = vsyncadd %s1181, %s1235
          %s1237 = smul.addr %s1232, 4
          %s1238 = sadd.s32 %s1233, %s1237
          %s1239 = smul.addr %s1238, 128
          %s1240 = scalar_lea.hbm %s7, %s1239
          %s1241 = sshll.u32 %s1184, 4
          %s1242 = int_to_ptr.vmem [resolvable:$true] %s1241
          %1247 = dma.vmem_to_hbm [thread:$0]  %s1242, 512, %s1240, %s1181, 256, 512, 16
        $region76: #{tpu_custom_call.1} parent=39 // pred_fallthru
          _
      $region40: #{tpu_custom_call.1} parent=5 // pred_fallthru
        _
      %p1248 = scmp.le.s32.totalorder 2, %s29
      // Predicated region
      $region77: #{tpu_custom_call.1} parent=5 // pred_check
        %p1249 = pneg %p1248
      $region78: #{tpu_custom_call.1} parent=5 // pred_check_branch
        %1251 = sbr.rel (%p1249) target = $region80
      $region79: #{tpu_custom_call.1} parent=5 // pred_region
        %s1252 = ssub.s32 %s29, 2
        // Predicated region
        $region81: #{tpu_custom_call.1} parent=79 // pred_check
          %p1253 = pneg %p217
        $region82: #{tpu_custom_call.1} parent=79 // pred_check_branch
          %1255 = sbr.rel (%p1253) target = $region84
        $region83: #{tpu_custom_call.1} parent=79 // pred_region
          %s1256 = sand.u32 %s202, 1
          %s1257 = scalar_lea.sflag [#allocation6], %s1256
          %s1258 = sand.u32 %s202, 1
          %s1259 = smul.addr %s1258, 64
          %s1260 = scalar_lea.vmem [#allocation12], %s1259
          %1261 = dma.done %s1257, 1024
        $region84: #{tpu_custom_call.1} parent=79 // pred_fallthru
          _
        // Predicated region
        $region85: #{tpu_custom_call.1} parent=79 // pred_check
          %p1262 = pneg %p247
        $region86: #{tpu_custom_call.1} parent=79 // pred_check_branch
          %1264 = sbr.rel (%p1262) target = $region88
        $region87: #{tpu_custom_call.1} parent=79 // pred_region
          %s1265 = sand.u32 %s35, 1
          %s1266 = scalar_lea.sflag [#allocation14], %s1265
          %s1267 = sand.u32 %s232, 1
          %s1268 = smul.addr %s1267, 128
          %s1269 = scalar_lea.vmem [#allocation13], %s1268
          %1270 = dma.done %s1266, 2048
        $region88: #{tpu_custom_call.1} parent=79 // pred_fallthru
          _
        // Predicated region
        $region89: #{tpu_custom_call.1} parent=79 // pred_check
          %p1271 = pneg %p275
        $region90: #{tpu_custom_call.1} parent=79 // pred_check_branch
          %1273 = sbr.rel (%p1271) target = $region92
        $region91: #{tpu_custom_call.1} parent=79 // pred_region
          %s1274 = sand.u32 %s35, 1
          %s1275 = scalar_lea.sflag [#allocation14], %s1274
          %s1276 = sand.u32 %s260, 1
          %s1277 = smul.addr %s1276, 32
          %s1278 = scalar_lea.vmem [#allocation15], %s1277
          %1279 = dma.done %s1275, 512
        $region92: #{tpu_custom_call.1} parent=79 // pred_fallthru
          _
      $region80: #{tpu_custom_call.1} parent=5 // pred_fallthru
        _
    $region6: #{tpu_custom_call.1} parent=1 // loop_footer
      %s33 = sadd.s32 1, %s29
    $region7: #{tpu_custom_call.1} parent=1 // loop_footer_branch
      %28 = sbr.rel target = $region3
    $region8: #{tpu_custom_call.1} parent=1 // loop_exit
      _
    %1280 = vsyncpa [#allocation5], 1
    %s1281 = scalar_lea.sflag [#allocation5], 1
    %1282 = vsyncpa %s1281, 1
    %1283 = vsyncpa [#allocation8], 1
    %s1284 = scalar_lea.sflag [#allocation8], 1
    %1285 = vsyncpa %s1284, 1
    %1286 = vsyncpa [#allocation11], 1
    %s1287 = scalar_lea.sflag [#allocation11], 1
    %1288 = vsyncpa %s1287, 1
    %1289 = vsyncpa [#allocation6], 1
    %s1290 = scalar_lea.sflag [#allocation6], 1
    %1291 = vsyncpa %s1290, 1
    %1292 = vsyncpa [#allocation14], 1
    %s1293 = scalar_lea.sflag [#allocation14], 1
    %1294 = vsyncpa %s1293, 1

</llo_original>
